<compile_context>
chip_gen: v7x
topology: tpu7x:2x2x1
jax: 0.10.0
libtpu: 0.0.40
codegen_flags: <defaults>
</compile_context>

<pallas_src>
import jax
import jax.numpy as jnp
from jax.experimental import pallas as pl
from jax.experimental.pallas import tpu as pltpu

latent_size = 16


def ae_kernel(x_ref,
              w1_ref, b1_ref, w2_ref, b2_ref, w3_ref, b3_ref,
              w4_ref, b4_ref, w5_ref, b5_ref, w6_ref, b6_ref,
              out_ref):
    def dense(h, w_ref, b_ref):
        # bf16 x bf16 on the MXU, f32 accumulation, f32 bias add.
        return jnp.dot(h.astype(w_ref.dtype), w_ref[...],
                       preferred_element_type=jnp.float32) + b_ref[...]

    h = x_ref[...]
    # encode
    h = jnp.tanh(dense(h, w1_ref, b1_ref))
    h = jnp.tanh(dense(h, w2_ref, b2_ref))
    h = jnp.tanh(dense(h, w3_ref, b3_ref))
    # decode
    h = jnp.tanh(dense(h, w4_ref, b4_ref))
    h = jnp.tanh(dense(h, w5_ref, b5_ref))
    h = dense(h, w6_ref, b6_ref)
    out_ref[...] = h.astype(out_ref.dtype)


def _pick_batch_tile(B, max_tb=128, target_steps=8):
    """Batch tile: <= max_tb rows, shrunk until the grid has >= target_steps
    steps (deep enough pipeline to hide DMA prologue/epilogue, and >= 4 steps
    per TensorCore on v7x). No divisibility requirement on B."""
    if B <= 8:
        return B           # full-extent block (always layout-legal)
    tb = max_tb
    while tb > 8 and pl.cdiv(B, tb) < target_steps:
        tb //= 2
    return tb


def _vmem_limit_bytes(TB, D, io_itemsize, params):
    """Derive the scoped VMEM limit from the actual footprint instead of a
    hardcoded constant (x/out tiles double-buffered + resident weights)."""
    tile_bytes = TB * D * io_itemsize * 2          # one x tile + one out tile
    w_bytes = sum(w.size * w.dtype.itemsize + b.size * b.dtype.itemsize
                  for w, b in params)
    need = 2 * tile_bytes + 2 * w_bytes + (8 << 20)   # + scratch headroom
    return int(min(max(need, 16 << 20), 48 << 20))    # stay under v7x's 64 MiB


def ae_forward(x, params, *, max_batch_tile=128):
    """params: list of (W (in,out) bf16, b (1,out) f32) tuples for the 6 layers."""
    B, D = x.shape
    TB = _pick_batch_tile(B, max_tb=max_batch_tile)
    grid = (pl.cdiv(B, TB),)

    flat_args = [x]
    in_specs = [pl.BlockSpec((TB, D), lambda i: (i, 0))]
    for w, b in params:
        flat_args += [w, b]
        # Constant index maps -> weights/biases are fetched once and stay
        # VMEM-resident across all batch tiles.
        in_specs += [pl.BlockSpec(w.shape, lambda i: (0, 0)),
                     pl.BlockSpec(b.shape, lambda i: (0, 0))]
    out_spec = pl.BlockSpec((TB, D), lambda i: (i, 0))

    # Cost estimate: x in + out bytes + weight/bias bytes; 2*B*in*out flops
    # per layer; one tanh per hidden activation element.
    flops = 0
    transcendentals = 0
    bytes_accessed = 2 * x.size * x.dtype.itemsize
    for li, (w, b) in enumerate(params):
        fan_in, fan_out = w.shape
        flops += 2 * B * fan_in * fan_out
        if li != len(params) - 1:
            transcendentals += B * fan_out
        bytes_accessed += w.size * w.dtype.itemsize + b.size * b.dtype.itemsize

    return pl.pallas_call(
        ae_kernel,
        out_shape=jax.ShapeDtypeStruct((B, D), x.dtype),
        grid=grid,
        in_specs=in_specs,
        out_specs=out_spec,
        compiler_params=pltpu.CompilerParams(
            dimension_semantics=("parallel",),
            vmem_limit_bytes=_vmem_limit_bytes(TB, D, x.dtype.itemsize, params),
        ),
        cost_estimate=pl.CostEstimate(
            flops=int(flops),
            transcendentals=int(transcendentals),
            bytes_accessed=int(bytes_accessed),
        ),
    )(*flat_args)


def init_linear(key, fan_in, fan_out):
    # PyTorch nn.Linear default init: U(-1/sqrt(fan_in), 1/sqrt(fan_in)).
    kw, kb = jax.random.split(key)
    bound = 1.0 / (fan_in ** 0.5)
    # Stored pre-transposed (in, out); weights bf16, biases f32.
    w = jax.random.uniform(kw, (fan_in, fan_out), jnp.float32,
                           -bound, bound).astype(jnp.bfloat16)
    b = jax.random.uniform(kb, (1, fan_out), jnp.float32, -bound, bound)
    return w, b


def make_params(key, intensity_count):
    dims = [
        (intensity_count, intensity_count // 32),          # enc1
        (intensity_count // 32, intensity_count // 128),   # enc2
        (intensity_count // 128, latent_size),             # enc3
        (latent_size, intensity_count // 128),             # dec1
        (intensity_count // 128, intensity_count // 32),   # dec2
        (intensity_count // 32, intensity_count),          # dec3
    ]
    keys = jax.random.split(key, len(dims))
    return [init_linear(k, i, o) for k, (i, o) in zip(keys, dims)]


def ae_reference(x, params):
    # Pure-JAX reference with the same mixed precision as the kernel
    # (bf16 matmul inputs, f32 accumulation / bias / tanh, output in x dtype).
    h = x
    for li, (w, b) in enumerate(params):
        h = jnp.dot(h.astype(w.dtype), w,
                    preferred_element_type=jnp.float32) + b
        if li != len(params) - 1:
            h = jnp.tanh(h)
    return h.astype(x.dtype)


if __name__ == "__main__":
    # Small but representative shapes: intensity_count must be divisible by
    # 128 (enc2 output width = ic // 128).
    intensity_count = 1024
    batch = 256

    key = jax.random.PRNGKey(0)
    kx, kp = jax.random.split(key)
    # End-to-end bf16 activations: the kernel is HBM-bound and the f32 x/out
    # tiles were the dominant traffic.
    x = jax.random.normal(kx, (batch, intensity_count),
                          jnp.float32).astype(jnp.bfloat16)
    params = make_params(kp, intensity_count)

    out = jax.block_until_ready(ae_forward(x, params))

    ref = ae_reference(x, params)
    assert out.shape == (batch, intensity_count)
    assert out.dtype == x.dtype
    out_f32 = out.astype(jnp.float32)
    ref_f32 = ref.astype(jnp.float32)
    max_err = jnp.max(jnp.abs(out_f32 - ref_f32))
    assert jnp.allclose(out_f32, ref_f32, atol=3e-2, rtol=3e-2), (
        f"mismatch vs reference (max |err| = {max_err})")

    print("KERNEL_OK")
</pallas_src>

<mosaic_0001>
module attributes {stable_mosaic.version = 11 : i64} {
  func.func @ae_kernel(%arg0: i32, %arg1: memref<32x1024xbf16, #tpu.memory_space<vmem>>, %arg2: memref<1024x32xbf16, #tpu.memory_space<vmem>>, %arg3: memref<1x32xf32, #tpu.memory_space<vmem>>, %arg4: memref<32x8xbf16, #tpu.memory_space<vmem>>, %arg5: memref<1x8xf32, #tpu.memory_space<vmem>>, %arg6: memref<8x16xbf16, #tpu.memory_space<vmem>>, %arg7: memref<1x16xf32, #tpu.memory_space<vmem>>, %arg8: memref<16x8xbf16, #tpu.memory_space<vmem>>, %arg9: memref<1x8xf32, #tpu.memory_space<vmem>>, %arg10: memref<8x32xbf16, #tpu.memory_space<vmem>>, %arg11: memref<1x32xf32, #tpu.memory_space<vmem>>, %arg12: memref<32x1024xbf16, #tpu.memory_space<vmem>>, %arg13: memref<1x1024xf32, #tpu.memory_space<vmem>>, %arg14: memref<32x1024xbf16, #tpu.memory_space<vmem>>) attributes {dimension_semantics = [#tpu.dimension_semantics<parallel>], iteration_bounds = array<i64: 8>, scalar_prefetch = 0 : i64, scratch_operands = 0 : i64, tpu.core_type = #tpu.core_type<tc>, window_params = [{transform_indices = @transform_0, window_bounds = array<i64: 32, 1024>}, {pipeline_mode = #tpu.pipeline_mode<synchronous>, transform_indices = @transform_1, window_bounds = array<i64: 1024, 32>}, {pipeline_mode = #tpu.pipeline_mode<synchronous>, transform_indices = @transform_2, window_bounds = array<i64: 1, 32>}, {pipeline_mode = #tpu.pipeline_mode<synchronous>, transform_indices = @transform_3, window_bounds = array<i64: 32, 8>}, {pipeline_mode = #tpu.pipeline_mode<synchronous>, transform_indices = @transform_4, window_bounds = array<i64: 1, 8>}, {pipeline_mode = #tpu.pipeline_mode<synchronous>, transform_indices = @transform_5, window_bounds = array<i64: 8, 16>}, {pipeline_mode = #tpu.pipeline_mode<synchronous>, transform_indices = @transform_6, window_bounds = array<i64: 1, 16>}, {pipeline_mode = #tpu.pipeline_mode<synchronous>, transform_indices = @transform_7, window_bounds = array<i64: 16, 8>}, {pipeline_mode = #tpu.pipeline_mode<synchronous>, transform_indices = @transform_8, window_bounds = array<i64: 1, 8>}, {pipeline_mode = #tpu.pipeline_mode<synchronous>, transform_indices = @transform_9, window_bounds = array<i64: 8, 32>}, {pipeline_mode = #tpu.pipeline_mode<synchronous>, transform_indices = @transform_10, window_bounds = array<i64: 1, 32>}, {pipeline_mode = #tpu.pipeline_mode<synchronous>, transform_indices = @transform_11, window_bounds = array<i64: 32, 1024>}, {pipeline_mode = #tpu.pipeline_mode<synchronous>, transform_indices = @transform_12, window_bounds = array<i64: 1, 1024>}, {transform_indices = @transform_13, window_bounds = array<i64: 32, 1024>}]} {
    %c0 = arith.constant 0 : index
    %c0_0 = arith.constant 0 : index
    %0 = vector.load %arg1[%c0, %c0_0] : memref<32x1024xbf16, #tpu.memory_space<vmem>>, vector<32x1024xbf16>
    %c0_1 = arith.constant 0 : index
    %c0_2 = arith.constant 0 : index
    %1 = vector.load %arg2[%c0_1, %c0_2] : memref<1024x32xbf16, #tpu.memory_space<vmem>>, vector<1024x32xbf16>
    %cst = arith.constant dense<0.000000e+00> : vector<32x32xf32>
    %2 = tpu.matmul %0, %1, %cst {dimension_numbers = #tpu.dot_dimension_numbers<[1], [0], [0], [1], [0, 0, 1, 1], [], []>} : vector<32x1024xbf16>, vector<1024x32xbf16>, vector<32x32xf32> -> vector<32x32xf32>
    %c0_3 = arith.constant 0 : index
    %c0_4 = arith.constant 0 : index
    %3 = vector.load %arg3[%c0_3, %c0_4] : memref<1x32xf32, #tpu.memory_space<vmem>>, vector<1x32xf32>
    %4 = vector.broadcast %3 : vector<1x32xf32> to vector<32x32xf32>
    %5 = arith.addf %2, %4 : vector<32x32xf32>
    %6 = math.tanh %5 : vector<32x32xf32>
    %7 = arith.truncf %6 : vector<32x32xf32> to vector<32x32xbf16>
    %c0_5 = arith.constant 0 : index
    %c0_6 = arith.constant 0 : index
    %8 = vector.load %arg4[%c0_5, %c0_6] : memref<32x8xbf16, #tpu.memory_space<vmem>>, vector<32x8xbf16>
    %cst_7 = arith.constant dense<0.000000e+00> : vector<32x8xf32>
    %9 = tpu.matmul %7, %8, %cst_7 {dimension_numbers = #tpu.dot_dimension_numbers<[1], [0], [0], [1], [0, 0, 1, 1], [], []>} : vector<32x32xbf16>, vector<32x8xbf16>, vector<32x8xf32> -> vector<32x8xf32>
    %c0_8 = arith.constant 0 : index
    %c0_9 = arith.constant 0 : index
    %10 = vector.load %arg5[%c0_8, %c0_9] : memref<1x8xf32, #tpu.memory_space<vmem>>, vector<1x8xf32>
    %11 = vector.broadcast %10 : vector<1x8xf32> to vector<32x8xf32>
    %12 = arith.addf %9, %11 : vector<32x8xf32>
    %13 = math.tanh %12 : vector<32x8xf32>
    %14 = arith.truncf %13 : vector<32x8xf32> to vector<32x8xbf16>
    %c0_10 = arith.constant 0 : index
    %c0_11 = arith.constant 0 : index
    %15 = vector.load %arg6[%c0_10, %c0_11] : memref<8x16xbf16, #tpu.memory_space<vmem>>, vector<8x16xbf16>
    %cst_12 = arith.constant dense<0.000000e+00> : vector<32x16xf32>
    %16 = tpu.matmul %14, %15, %cst_12 {dimension_numbers = #tpu.dot_dimension_numbers<[1], [0], [0], [1], [0, 0, 1, 1], [], []>} : vector<32x8xbf16>, vector<8x16xbf16>, vector<32x16xf32> -> vector<32x16xf32>
    %c0_13 = arith.constant 0 : index
    %c0_14 = arith.constant 0 : index
    %17 = vector.load %arg7[%c0_13, %c0_14] : memref<1x16xf32, #tpu.memory_space<vmem>>, vector<1x16xf32>
    %18 = vector.broadcast %17 : vector<1x16xf32> to vector<32x16xf32>
    %19 = arith.addf %16, %18 : vector<32x16xf32>
    %20 = math.tanh %19 : vector<32x16xf32>
    %21 = arith.truncf %20 : vector<32x16xf32> to vector<32x16xbf16>
    %c0_15 = arith.constant 0 : index
    %c0_16 = arith.constant 0 : index
    %22 = vector.load %arg8[%c0_15, %c0_16] : memref<16x8xbf16, #tpu.memory_space<vmem>>, vector<16x8xbf16>
    %cst_17 = arith.constant dense<0.000000e+00> : vector<32x8xf32>
    %23 = tpu.matmul %21, %22, %cst_17 {dimension_numbers = #tpu.dot_dimension_numbers<[1], [0], [0], [1], [0, 0, 1, 1], [], []>} : vector<32x16xbf16>, vector<16x8xbf16>, vector<32x8xf32> -> vector<32x8xf32>
    %c0_18 = arith.constant 0 : index
    %c0_19 = arith.constant 0 : index
    %24 = vector.load %arg9[%c0_18, %c0_19] : memref<1x8xf32, #tpu.memory_space<vmem>>, vector<1x8xf32>
    %25 = vector.broadcast %24 : vector<1x8xf32> to vector<32x8xf32>
    %26 = arith.addf %23, %25 : vector<32x8xf32>
    %27 = math.tanh %26 : vector<32x8xf32>
    %28 = arith.truncf %27 : vector<32x8xf32> to vector<32x8xbf16>
    %c0_20 = arith.constant 0 : index
    %c0_21 = arith.constant 0 : index
    %29 = vector.load %arg10[%c0_20, %c0_21] : memref<8x32xbf16, #tpu.memory_space<vmem>>, vector<8x32xbf16>
    %cst_22 = arith.constant dense<0.000000e+00> : vector<32x32xf32>
    %30 = tpu.matmul %28, %29, %cst_22 {dimension_numbers = #tpu.dot_dimension_numbers<[1], [0], [0], [1], [0, 0, 1, 1], [], []>} : vector<32x8xbf16>, vector<8x32xbf16>, vector<32x32xf32> -> vector<32x32xf32>
    %c0_23 = arith.constant 0 : index
    %c0_24 = arith.constant 0 : index
    %31 = vector.load %arg11[%c0_23, %c0_24] : memref<1x32xf32, #tpu.memory_space<vmem>>, vector<1x32xf32>
    %32 = vector.broadcast %31 : vector<1x32xf32> to vector<32x32xf32>
    %33 = arith.addf %30, %32 : vector<32x32xf32>
    %34 = math.tanh %33 : vector<32x32xf32>
    %35 = arith.truncf %34 : vector<32x32xf32> to vector<32x32xbf16>
    %c0_25 = arith.constant 0 : index
    %c0_26 = arith.constant 0 : index
    %36 = vector.load %arg12[%c0_25, %c0_26] : memref<32x1024xbf16, #tpu.memory_space<vmem>>, vector<32x1024xbf16>
    %cst_27 = arith.constant dense<0.000000e+00> : vector<32x1024xf32>
    %37 = tpu.matmul %35, %36, %cst_27 {dimension_numbers = #tpu.dot_dimension_numbers<[1], [0], [0], [1], [0, 0, 1, 1], [], []>} : vector<32x32xbf16>, vector<32x1024xbf16>, vector<32x1024xf32> -> vector<32x1024xf32>
    %c0_28 = arith.constant 0 : index
    %c0_29 = arith.constant 0 : index
    %38 = vector.load %arg13[%c0_28, %c0_29] : memref<1x1024xf32, #tpu.memory_space<vmem>>, vector<1x1024xf32>
    %39 = vector.broadcast %38 : vector<1x1024xf32> to vector<32x1024xf32>
    %40 = arith.addf %37, %39 : vector<32x1024xf32>
    %41 = arith.truncf %40 : vector<32x1024xf32> to vector<32x1024xbf16>
    %c0_30 = arith.constant 0 : index
    %c0_31 = arith.constant 0 : index
    %42 = vector.load %arg14[%c0_30, %c0_31] : memref<32x1024xbf16, #tpu.memory_space<vmem>>, vector<32x1024xbf16>
    tpu.vector_store %arg14[%c0_30, %c0_31], %41 {strides = array<i32>} : memref<32x1024xbf16, #tpu.memory_space<vmem>>, vector<32x1024xbf16>,
    return
  }
  func.func @transform_0(%arg0: i32) -> (i32, i32) {
    %c0_i32 = arith.constant 0 : i32
    %c0_i32_0 = arith.constant 0 : i32
    return %arg0, %c0_i32 : i32, i32
  }
  func.func @transform_1(%arg0: i32) -> (i32, i32) {
    %c0_i32 = arith.constant 0 : i32
    %c0_i32_0 = arith.constant 0 : i32
    %c0_i32_1 = arith.constant 0 : i32
    return %c0_i32, %c0_i32_0 : i32, i32
  }
  func.func @transform_2(%arg0: i32) -> (i32, i32) {
    %c0_i32 = arith.constant 0 : i32
    %c0_i32_0 = arith.constant 0 : i32
    %c0_i32_1 = arith.constant 0 : i32
    return %c0_i32, %c0_i32_0 : i32, i32
  }
  func.func @transform_3(%arg0: i32) -> (i32, i32) {
    %c0_i32 = arith.constant 0 : i32
    %c0_i32_0 = arith.constant 0 : i32
    %c0_i32_1 = arith.constant 0 : i32
    return %c0_i32, %c0_i32_0 : i32, i32
  }
  func.func @transform_4(%arg0: i32) -> (i32, i32) {
    %c0_i32 = arith.constant 0 : i32
    %c0_i32_0 = arith.constant 0 : i32
    %c0_i32_1 = arith.constant 0 : i32
    return %c0_i32, %c0_i32_0 : i32, i32
  }
  func.func @transform_5(%arg0: i32) -> (i32, i32) {
    %c0_i32 = arith.constant 0 : i32
    %c0_i32_0 = arith.constant 0 : i32
    %c0_i32_1 = arith.constant 0 : i32
    return %c0_i32, %c0_i32_0 : i32, i32
  }
  func.func @transform_6(%arg0: i32) -> (i32, i32) {
    %c0_i32 = arith.constant 0 : i32
    %c0_i32_0 = arith.constant 0 : i32
    %c0_i32_1 = arith.constant 0 : i32
    return %c0_i32, %c0_i32_0 : i32, i32
  }
  func.func @transform_7(%arg0: i32) -> (i32, i32) {
    %c0_i32 = arith.constant 0 : i32
    %c0_i32_0 = arith.constant 0 : i32
    %c0_i32_1 = arith.constant 0 : i32
    return %c0_i32, %c0_i32_0 : i32, i32
  }
  func.func @transform_8(%arg0: i32) -> (i32, i32) {
    %c0_i32 = arith.constant 0 : i32
    %c0_i32_0 = arith.constant 0 : i32
    %c0_i32_1 = arith.constant 0 : i32
    return %c0_i32, %c0_i32_0 : i32, i32
  }
  func.func @transform_9(%arg0: i32) -> (i32, i32) {
    %c0_i32 = arith.constant 0 : i32
    %c0_i32_0 = arith.constant 0 : i32
    %c0_i32_1 = arith.constant 0 : i32
    return %c0_i32, %c0_i32_0 : i32, i32
  }
  func.func @transform_10(%arg0: i32) -> (i32, i32) {
    %c0_i32 = arith.constant 0 : i32
    %c0_i32_0 = arith.constant 0 : i32
    %c0_i32_1 = arith.constant 0 : i32
    return %c0_i32, %c0_i32_0 : i32, i32
  }
  func.func @transform_11(%arg0: i32) -> (i32, i32) {
    %c0_i32 = arith.constant 0 : i32
    %c0_i32_0 = arith.constant 0 : i32
    %c0_i32_1 = arith.constant 0 : i32
    return %c0_i32, %c0_i32_0 : i32, i32
  }
  func.func @transform_12(%arg0: i32) -> (i32, i32) {
    %c0_i32 = arith.constant 0 : i32
    %c0_i32_0 = arith.constant 0 : i32
    %c0_i32_1 = arith.constant 0 : i32
    return %c0_i32, %c0_i32_0 : i32, i32
  }
  func.func @transform_13(%arg0: i32) -> (i32, i32) {
    %c0_i32 = arith.constant 0 : i32
    %c0_i32_0 = arith.constant 0 : i32
    return %arg0, %c0_i32 : i32, i32
  }
}

</mosaic_0001>

<llo_original>
// kernel: tpu_custom_call.1
$region0: #{tpu_custom_call.1}
  #allocation0 [shape = 'u32[]', space=smem, size = 0x4, offset = 0x4, fixed_abs, tag = 'smem constant byte address 0x4 - core index']
  #allocation1 [shape = 'u32[144,128]{1,0:T(1,128)}', space=vmem, size = 0x12000, scoped, tag = 'internal scratch']
  %s0 = inlined_call_operand.hbm [shape: bf16[256,1024], index: 0, kind: input, shape index: {}]
  %s1 = inlined_call_operand.vmem [shape: bf16[1024,32], index: 1, kind: input, shape index: {}]
  %s2 = inlined_call_operand.vmem [shape: f32[1,32], index: 2, kind: input, shape index: {}]
  %s3 = inlined_call_operand.vmem [shape: bf16[32,8], index: 3, kind: input, shape index: {}]
  %s4 = inlined_call_operand.vmem [shape: f32[1,8], index: 4, kind: input, shape index: {}]
  %s5 = inlined_call_operand.vmem [shape: bf16[8,16], index: 5, kind: input, shape index: {}]
  %s6 = inlined_call_operand.vmem [shape: f32[1,16], index: 6, kind: input, shape index: {}]
  %s7 = inlined_call_operand.vmem [shape: bf16[16,8], index: 7, kind: input, shape index: {}]
  %s8 = inlined_call_operand.vmem [shape: f32[1,8], index: 8, kind: input, shape index: {}]
  %s9 = inlined_call_operand.vmem [shape: bf16[8,32], index: 9, kind: input, shape index: {}]
  %s10 = inlined_call_operand.vmem [shape: f32[1,32], index: 10, kind: input, shape index: {}]
  %s11 = inlined_call_operand.vmem [shape: bf16[32,1024], index: 11, kind: input, shape index: {}]
  %s12 = inlined_call_operand.vmem [shape: f32[1,1024], index: 12, kind: input, shape index: {}]
  %s13 = inlined_call_operand.hbm [shape: bf16[256,1024], index: 13, kind: output, shape index: {}]
  %s14 = sld [smem:[#allocation0]]
  $region89: #{tpu_custom_call.1} parent=0
    _
  %s16 = ssub.s32 1, %s14
  %s17 = scalar_select 0, %s16, %s14
  $region1: #{tpu_custom_call.1} parent=0
    #allocation2 [shape = 'u8[131072]{0}', space=vmem, size = 0x20000, scoped, tag = 'input window, operand 0']
    #allocation3 [shape = 's32[2]{0}', space=sflag, size = 0x8, scoped, tag = 'scoped memory for tpu_custom_call.1']
    #allocation4 [shape = 's32[2]{0}', space=sflag, size = 0x8, scoped, tag = 'scoped memory for tpu_custom_call.1']
    #allocation5 [shape = 'u8[131072]{0}', space=vmem, size = 0x20000, scoped, tag = 'output window, operand 0']
    %18 = vsyncpa [#allocation3], 0
    %s19 = scalar_lea.sflag [#allocation3], 1
    %20 = vsyncpa %s19, 0
    %21 = vsyncpa [#allocation4], 0
    %s22 = scalar_lea.sflag [#allocation4], 1
    %23 = vsyncpa %s22, 0
    loop: start=0, step=1, limit=10
    $region2: #{tpu_custom_call.1} parent=1 // loop_pre_header
      _
    $region3: #{tpu_custom_call.1} parent=1 // loop_header
      %s25 = sphi 0, %s29
      %p26 = scmp.ge.s32.totalorder %s25, 10
      %s35 = sphi 0, %s37
      %s38 = sphi 0, %s35
      %s39 = sphi 0, %s38
      %s55 = sphi 0, %s39
      %s59 = sphi 0, %s59
      %s61 = sphi 0, %s59
      %s62 = sphi 0, %s61
      %s76 = sphi 0, %s62
      %s80 = sphi 0, %s80
      %s82 = sphi 0, %s80
      %s83 = sphi 0, %s82
      %s97 = sphi 0, %s83
      %s101 = sphi 0, %s101
      %s103 = sphi 0, %s101
      %s104 = sphi 0, %s103
      %s118 = sphi 0, %s104
      %s122 = sphi 0, %s122
      %s124 = sphi 0, %s122
      %s125 = sphi 0, %s124
      %s139 = sphi 0, %s125
      %s143 = sphi 0, %s143
      %s145 = sphi 0, %s143
      %s146 = sphi 0, %s145
      %s160 = sphi 0, %s146
      %s164 = sphi 0, %s164
      %s166 = sphi 0, %s164
      %s167 = sphi 0, %s166
      %s181 = sphi 0, %s167
      %s185 = sphi 0, %s185
      %s187 = sphi 0, %s185
      %s188 = sphi 0, %s187
      %s202 = sphi 0, %s188
      %s206 = sphi 0, %s206
      %s208 = sphi 0, %s206
      %s209 = sphi 0, %s208
      %s223 = sphi 0, %s209
      %s227 = sphi 0, %s227
      %s229 = sphi 0, %s227
      %s230 = sphi 0, %s229
      %s244 = sphi 0, %s230
      %s248 = sphi 0, %s248
      %s250 = sphi 0, %s248
      %s251 = sphi 0, %s250
      %s265 = sphi 0, %s251
      %s269 = sphi 0, %s269
      %s271 = sphi 0, %s269
      %s272 = sphi 0, %s271
      %s286 = sphi 0, %s272
      %s290 = sphi 0, %s290
      %s292 = sphi 0, %s290
      %s293 = sphi 0, %s292
      %s307 = sphi 0, %s293
      %s313 = sphi 0, %s315
      %s316 = sphi 0, %s313
      %s317 = sphi 0, %s316
      %s333 = sphi 0, %s317
    $region4: #{tpu_custom_call.1} parent=1 // loop_header_branch
      %28 = sbr.rel (%p26) target = $region8
    $region5: #{tpu_custom_call.1} parent=1 // loop_body
      %s30 = ssub.s32 %s25, 1
      %s31 = ssub.s32 %s25, 2
      %s32 = sadd.s32 %s25, 1
      %s33 = ssub.s32 %s25, %s32
      %p34 = scmp.eq.s32.totalorder %s33, 0
      %s36 = sadd.s32 %s35, 1
      %s37 = scalar_select %p34, %s35, %s36
      %p40 = pneg %p34
      %p41 = scmp.eq.s32.totalorder %s25, 7
      %p42 = por %p40, %p41
      %p43 = scmp.ne.s32.totalorder %s35, %s38
      %p44 = scmp.eq.s32.totalorder %s25, 0
      %p45 = por %p43, %p44
      %p46 = scmp.ne.s32.totalorder %s35, %s38
      %p47 = scmp.eq.s32.totalorder %s30, 7
      %p48 = por %p46, %p47
      %p49 = scmp.ne.s32.totalorder %s38, %s39
      %p50 = scmp.eq.s32.totalorder %s30, 0
      %p51 = por %p49, %p50
      %p52 = scmp.ne.s32.totalorder %s38, %s39
      %p53 = scmp.eq.s32.totalorder %s31, 7
      %p54 = por %p52, %p53
      %p56 = scmp.ne.s32.totalorder %s39, %s55
      %p57 = scmp.eq.s32.totalorder %s31, 0
      %p58 = por %p56, %p57
      %s60 = sadd.s32 %s59, 1
      %p63 = scmp.eq.s32.totalorder %s25, 7
      %p64 = scmp.ne.s32.totalorder %s59, %s61
      %p65 = scmp.eq.s32.totalorder %s25, 0
      %p66 = por %p64, %p65
      %p67 = scmp.ne.s32.totalorder %s59, %s61
      %p68 = scmp.eq.s32.totalorder %s30, 7
      %p69 = por %p67, %p68
      %p70 = scmp.ne.s32.totalorder %s61, %s62
      %p71 = scmp.eq.s32.totalorder %s30, 0
      %p72 = por %p70, %p71
      %p73 = scmp.ne.s32.totalorder %s61, %s62
      %p74 = scmp.eq.s32.totalorder %s31, 7
      %p75 = por %p73, %p74
      %p77 = scmp.ne.s32.totalorder %s62, %s76
      %p78 = scmp.eq.s32.totalorder %s31, 0
      %p79 = por %p77, %p78
      %s81 = sadd.s32 %s80, 1
      %p84 = scmp.eq.s32.totalorder %s25, 7
      %p85 = scmp.ne.s32.totalorder %s80, %s82
      %p86 = scmp.eq.s32.totalorder %s25, 0
      %p87 = por %p85, %p86
      %p88 = scmp.ne.s32.totalorder %s80, %s82
      %p89 = scmp.eq.s32.totalorder %s30, 7
      %p90 = por %p88, %p89
      %p91 = scmp.ne.s32.totalorder %s82, %s83
      %p92 = scmp.eq.s32.totalorder %s30, 0
      %p93 = por %p91, %p92
      %p94 = scmp.ne.s32.totalorder %s82, %s83
      %p95 = scmp.eq.s32.totalorder %s31, 7
      %p96 = por %p94, %p95
      %p98 = scmp.ne.s32.totalorder %s83, %s97
      %p99 = scmp.eq.s32.totalorder %s31, 0
      %p100 = por %p98, %p99
      %s102 = sadd.s32 %s101, 1
      %p105 = scmp.eq.s32.totalorder %s25, 7
      %p106 = scmp.ne.s32.totalorder %s101, %s103
      %p107 = scmp.eq.s32.totalorder %s25, 0
      %p108 = por %p106, %p107
      %p109 = scmp.ne.s32.totalorder %s101, %s103
      %p110 = scmp.eq.s32.totalorder %s30, 7
      %p111 = por %p109, %p110
      %p112 = scmp.ne.s32.totalorder %s103, %s104
      %p113 = scmp.eq.s32.totalorder %s30, 0
      %p114 = por %p112, %p113
      %p115 = scmp.ne.s32.totalorder %s103, %s104
      %p116 = scmp.eq.s32.totalorder %s31, 7
      %p117 = por %p115, %p116
      %p119 = scmp.ne.s32.totalorder %s104, %s118
      %p120 = scmp.eq.s32.totalorder %s31, 0
      %p121 = por %p119, %p120
      %s123 = sadd.s32 %s122, 1
      %p126 = scmp.eq.s32.totalorder %s25, 7
      %p127 = scmp.ne.s32.totalorder %s122, %s124
      %p128 = scmp.eq.s32.totalorder %s25, 0
      %p129 = por %p127, %p128
      %p130 = scmp.ne.s32.totalorder %s122, %s124
      %p131 = scmp.eq.s32.totalorder %s30, 7
      %p132 = por %p130, %p131
      %p133 = scmp.ne.s32.totalorder %s124, %s125
      %p134 = scmp.eq.s32.totalorder %s30, 0
      %p135 = por %p133, %p134
      %p136 = scmp.ne.s32.totalorder %s124, %s125
      %p137 = scmp.eq.s32.totalorder %s31, 7
      %p138 = por %p136, %p137
      %p140 = scmp.ne.s32.totalorder %s125, %s139
      %p141 = scmp.eq.s32.totalorder %s31, 0
      %p142 = por %p140, %p141
      %s144 = sadd.s32 %s143, 1
      %p147 = scmp.eq.s32.totalorder %s25, 7
      %p148 = scmp.ne.s32.totalorder %s143, %s145
      %p149 = scmp.eq.s32.totalorder %s25, 0
      %p150 = por %p148, %p149
      %p151 = scmp.ne.s32.totalorder %s143, %s145
      %p152 = scmp.eq.s32.totalorder %s30, 7
      %p153 = por %p151, %p152
      %p154 = scmp.ne.s32.totalorder %s145, %s146
      %p155 = scmp.eq.s32.totalorder %s30, 0
      %p156 = por %p154, %p155
      %p157 = scmp.ne.s32.totalorder %s145, %s146
      %p158 = scmp.eq.s32.totalorder %s31, 7
      %p159 = por %p157, %p158
      %p161 = scmp.ne.s32.totalorder %s146, %s160
      %p162 = scmp.eq.s32.totalorder %s31, 0
      %p163 = por %p161, %p162
      %s165 = sadd.s32 %s164, 1
      %p168 = scmp.eq.s32.totalorder %s25, 7
      %p169 = scmp.ne.s32.totalorder %s164, %s166
      %p170 = scmp.eq.s32.totalorder %s25, 0
      %p171 = por %p169, %p170
      %p172 = scmp.ne.s32.totalorder %s164, %s166
      %p173 = scmp.eq.s32.totalorder %s30, 7
      %p174 = por %p172, %p173
      %p175 = scmp.ne.s32.totalorder %s166, %s167
      %p176 = scmp.eq.s32.totalorder %s30, 0
      %p177 = por %p175, %p176
      %p178 = scmp.ne.s32.totalorder %s166, %s167
      %p179 = scmp.eq.s32.totalorder %s31, 7
      %p180 = por %p178, %p179
      %p182 = scmp.ne.s32.totalorder %s167, %s181
      %p183 = scmp.eq.s32.totalorder %s31, 0
      %p184 = por %p182, %p183
      %s186 = sadd.s32 %s185, 1
      %p189 = scmp.eq.s32.totalorder %s25, 7
      %p190 = scmp.ne.s32.totalorder %s185, %s187
      %p191 = scmp.eq.s32.totalorder %s25, 0
      %p192 = por %p190, %p191
      %p193 = scmp.ne.s32.totalorder %s185, %s187
      %p194 = scmp.eq.s32.totalorder %s30, 7
      %p195 = por %p193, %p194
      %p196 = scmp.ne.s32.totalorder %s187, %s188
      %p197 = scmp.eq.s32.totalorder %s30, 0
      %p198 = por %p196, %p197
      %p199 = scmp.ne.s32.totalorder %s187, %s188
      %p200 = scmp.eq.s32.totalorder %s31, 7
      %p201 = por %p199, %p200
      %p203 = scmp.ne.s32.totalorder %s188, %s202
      %p204 = scmp.eq.s32.totalorder %s31, 0
      %p205 = por %p203, %p204
      %s207 = sadd.s32 %s206, 1
      %p210 = scmp.eq.s32.totalorder %s25, 7
      %p211 = scmp.ne.s32.totalorder %s206, %s208
      %p212 = scmp.eq.s32.totalorder %s25, 0
      %p213 = por %p211, %p212
      %p214 = scmp.ne.s32.totalorder %s206, %s208
      %p215 = scmp.eq.s32.totalorder %s30, 7
      %p216 = por %p214, %p215
      %p217 = scmp.ne.s32.totalorder %s208, %s209
      %p218 = scmp.eq.s32.totalorder %s30, 0
      %p219 = por %p217, %p218
      %p220 = scmp.ne.s32.totalorder %s208, %s209
      %p221 = scmp.eq.s32.totalorder %s31, 7
      %p222 = por %p220, %p221
      %p224 = scmp.ne.s32.totalorder %s209, %s223
      %p225 = scmp.eq.s32.totalorder %s31, 0
      %p226 = por %p224, %p225
      %s228 = sadd.s32 %s227, 1
      %p231 = scmp.eq.s32.totalorder %s25, 7
      %p232 = scmp.ne.s32.totalorder %s227, %s229
      %p233 = scmp.eq.s32.totalorder %s25, 0
      %p234 = por %p232, %p233
      %p235 = scmp.ne.s32.totalorder %s227, %s229
      %p236 = scmp.eq.s32.totalorder %s30, 7
      %p237 = por %p235, %p236
      %p238 = scmp.ne.s32.totalorder %s229, %s230
      %p239 = scmp.eq.s32.totalorder %s30, 0
      %p240 = por %p238, %p239
      %p241 = scmp.ne.s32.totalorder %s229, %s230
      %p242 = scmp.eq.s32.totalorder %s31, 7
      %p243 = por %p241, %p242
      %p245 = scmp.ne.s32.totalorder %s230, %s244
      %p246 = scmp.eq.s32.totalorder %s31, 0
      %p247 = por %p245, %p246
      %s249 = sadd.s32 %s248, 1
      %p252 = scmp.eq.s32.totalorder %s25, 7
      %p253 = scmp.ne.s32.totalorder %s248, %s250
      %p254 = scmp.eq.s32.totalorder %s25, 0
      %p255 = por %p253, %p254
      %p256 = scmp.ne.s32.totalorder %s248, %s250
      %p257 = scmp.eq.s32.totalorder %s30, 7
      %p258 = por %p256, %p257
      %p259 = scmp.ne.s32.totalorder %s250, %s251
      %p260 = scmp.eq.s32.totalorder %s30, 0
      %p261 = por %p259, %p260
      %p262 = scmp.ne.s32.totalorder %s250, %s251
      %p263 = scmp.eq.s32.totalorder %s31, 7
      %p264 = por %p262, %p263
      %p266 = scmp.ne.s32.totalorder %s251, %s265
      %p267 = scmp.eq.s32.totalorder %s31, 0
      %p268 = por %p266, %p267
      %s270 = sadd.s32 %s269, 1
      %p273 = scmp.eq.s32.totalorder %s25, 7
      %p274 = scmp.ne.s32.totalorder %s269, %s271
      %p275 = scmp.eq.s32.totalorder %s25, 0
      %p276 = por %p274, %p275
      %p277 = scmp.ne.s32.totalorder %s269, %s271
      %p278 = scmp.eq.s32.totalorder %s30, 7
      %p279 = por %p277, %p278
      %p280 = scmp.ne.s32.totalorder %s271, %s272
      %p281 = scmp.eq.s32.totalorder %s30, 0
      %p282 = por %p280, %p281
      %p283 = scmp.ne.s32.totalorder %s271, %s272
      %p284 = scmp.eq.s32.totalorder %s31, 7
      %p285 = por %p283, %p284
      %p287 = scmp.ne.s32.totalorder %s272, %s286
      %p288 = scmp.eq.s32.totalorder %s31, 0
      %p289 = por %p287, %p288
      %s291 = sadd.s32 %s290, 1
      %p294 = scmp.eq.s32.totalorder %s25, 7
      %p295 = scmp.ne.s32.totalorder %s290, %s292
      %p296 = scmp.eq.s32.totalorder %s25, 0
      %p297 = por %p295, %p296
      %p298 = scmp.ne.s32.totalorder %s290, %s292
      %p299 = scmp.eq.s32.totalorder %s30, 7
      %p300 = por %p298, %p299
      %p301 = scmp.ne.s32.totalorder %s292, %s293
      %p302 = scmp.eq.s32.totalorder %s30, 0
      %p303 = por %p301, %p302
      %p304 = scmp.ne.s32.totalorder %s292, %s293
      %p305 = scmp.eq.s32.totalorder %s31, 7
      %p306 = por %p304, %p305
      %p308 = scmp.ne.s32.totalorder %s293, %s307
      %p309 = scmp.eq.s32.totalorder %s31, 0
      %p310 = por %p308, %p309
      %s311 = ssub.s32 %s25, %s32
      %p312 = scmp.eq.s32.totalorder %s311, 0
      %s314 = sadd.s32 %s313, 1
      %s315 = scalar_select %p312, %s313, %s314
      %p318 = pneg %p312
      %p319 = scmp.eq.s32.totalorder %s25, 7
      %p320 = por %p318, %p319
      %p321 = scmp.ne.s32.totalorder %s313, %s316
      %p322 = scmp.eq.s32.totalorder %s25, 0
      %p323 = por %p321, %p322
      %p324 = scmp.ne.s32.totalorder %s313, %s316
      %p325 = scmp.eq.s32.totalorder %s30, 7
      %p326 = por %p324, %p325
      %p327 = scmp.ne.s32.totalorder %s316, %s317
      %p328 = scmp.eq.s32.totalorder %s30, 0
      %p329 = por %p327, %p328
      %p330 = scmp.ne.s32.totalorder %s316, %s317
      %p331 = scmp.eq.s32.totalorder %s31, 7
      %p332 = por %p330, %p331
      %p334 = scmp.ne.s32.totalorder %s317, %s333
      %p335 = scmp.eq.s32.totalorder %s31, 0
      %p336 = por %p334, %p335
      %p337 = scmp.le.s32.totalorder 1, %s25
      %p338 = scmp.lt.s32.totalorder %s25, 9
      %p339 = pnand %p337, %p338
      %p340 = pneg %p339
      // Predicated region
      $region9: #{tpu_custom_call.1} parent=5 // pred_check
        _
      $region10: #{tpu_custom_call.1} parent=5 // pred_check_branch
        %342 = sbr.rel (%p339) target = $region12
      $region11: #{tpu_custom_call.1} parent=5 // pred_region
        %s343 = ssub.s32 %s25, 1
        // Predicated region
        $region13: #{tpu_custom_call.1} parent=11 // pred_check
          %p344 = pneg %p72
        $region14: #{tpu_custom_call.1} parent=11 // pred_check_branch
          %346 = sbr.rel (%p344) target = $region16
        $region15: #{tpu_custom_call.1} parent=11 // pred_region
          _
        $region16: #{tpu_custom_call.1} parent=11 // pred_fallthru
          _
        // Predicated region
        $region17: #{tpu_custom_call.1} parent=11 // pred_check
          %p347 = pneg %p93
        $region18: #{tpu_custom_call.1} parent=11 // pred_check_branch
          %349 = sbr.rel (%p347) target = $region20
        $region19: #{tpu_custom_call.1} parent=11 // pred_region
          _
        $region20: #{tpu_custom_call.1} parent=11 // pred_fallthru
          _
        // Predicated region
        $region21: #{tpu_custom_call.1} parent=11 // pred_check
          %p350 = pneg %p114
        $region22: #{tpu_custom_call.1} parent=11 // pred_check_branch
          %352 = sbr.rel (%p350) target = $region24
        $region23: #{tpu_custom_call.1} parent=11 // pred_region
          _
        $region24: #{tpu_custom_call.1} parent=11 // pred_fallthru
          _
        // Predicated region
        $region25: #{tpu_custom_call.1} parent=11 // pred_check
          %p353 = pneg %p135
        $region26: #{tpu_custom_call.1} parent=11 // pred_check_branch
          %355 = sbr.rel (%p353) target = $region28
        $region27: #{tpu_custom_call.1} parent=11 // pred_region
          _
        $region28: #{tpu_custom_call.1} parent=11 // pred_fallthru
          _
        // Predicated region
        $region29: #{tpu_custom_call.1} parent=11 // pred_check
          %p356 = pneg %p156
        $region30: #{tpu_custom_call.1} parent=11 // pred_check_branch
          %358 = sbr.rel (%p356) target = $region32
        $region31: #{tpu_custom_call.1} parent=11 // pred_region
          _
        $region32: #{tpu_custom_call.1} parent=11 // pred_fallthru
          _
        // Predicated region
        $region33: #{tpu_custom_call.1} parent=11 // pred_check
          %p359 = pneg %p177
        $region34: #{tpu_custom_call.1} parent=11 // pred_check_branch
          %361 = sbr.rel (%p359) target = $region36
        $region35: #{tpu_custom_call.1} parent=11 // pred_region
          _
        $region36: #{tpu_custom_call.1} parent=11 // pred_fallthru
          _
        // Predicated region
        $region37: #{tpu_custom_call.1} parent=11 // pred_check
          %p362 = pneg %p198
        $region38: #{tpu_custom_call.1} parent=11 // pred_check_branch
          %364 = sbr.rel (%p362) target = $region40
        $region39: #{tpu_custom_call.1} parent=11 // pred_region
          _
        $region40: #{tpu_custom_call.1} parent=11 // pred_fallthru
          _
        // Predicated region
        $region41: #{tpu_custom_call.1} parent=11 // pred_check
          %p365 = pneg %p219
        $region42: #{tpu_custom_call.1} parent=11 // pred_check_branch
          %367 = sbr.rel (%p365) target = $region44
        $region43: #{tpu_custom_call.1} parent=11 // pred_region
          _
        $region44: #{tpu_custom_call.1} parent=11 // pred_fallthru
          _
        // Predicated region
        $region45: #{tpu_custom_call.1} parent=11 // pred_check
          %p368 = pneg %p240
        $region46: #{tpu_custom_call.1} parent=11 // pred_check_branch
          %370 = sbr.rel (%p368) target = $region48
        $region47: #{tpu_custom_call.1} parent=11 // pred_region
          _
        $region48: #{tpu_custom_call.1} parent=11 // pred_fallthru
          _
        // Predicated region
        $region49: #{tpu_custom_call.1} parent=11 // pred_check
          %p371 = pneg %p261
        $region50: #{tpu_custom_call.1} parent=11 // pred_check_branch
          %373 = sbr.rel (%p371) target = $region52
        $region51: #{tpu_custom_call.1} parent=11 // pred_region
          _
        $region52: #{tpu_custom_call.1} parent=11 // pred_fallthru
          _
        // Predicated region
        $region53: #{tpu_custom_call.1} parent=11 // pred_check
          %p374 = pneg %p282
        $region54: #{tpu_custom_call.1} parent=11 // pred_check_branch
          %376 = sbr.rel (%p374) target = $region56
        $region55: #{tpu_custom_call.1} parent=11 // pred_region
          _
        $region56: #{tpu_custom_call.1} parent=11 // pred_fallthru
          _
        // Predicated region
        $region57: #{tpu_custom_call.1} parent=11 // pred_check
          %p377 = pneg %p303
        $region58: #{tpu_custom_call.1} parent=11 // pred_check_branch
          %379 = sbr.rel (%p377) target = $region60
        $region59: #{tpu_custom_call.1} parent=11 // pred_region
          _
        $region60: #{tpu_custom_call.1} parent=11 // pred_fallthru
          _
      $region12: #{tpu_custom_call.1} parent=5 // pred_fallthru
        _
      %p380 = scmp.lt.s32.totalorder %s25, 8
      // Predicated region
      $region61: #{tpu_custom_call.1} parent=5 // pred_check
        %p381 = pneg %p380
      $region62: #{tpu_custom_call.1} parent=5 // pred_check_branch
        %383 = sbr.rel (%p381) target = $region64
      $region63: #{tpu_custom_call.1} parent=5 // pred_region
        // Predicated region
        $region65: #{tpu_custom_call.1} parent=63 // pred_check
          %p384 = pneg %p45
        $region66: #{tpu_custom_call.1} parent=63 // pred_check_branch
          %386 = sbr.rel (%p384) target = $region68
        $region67: #{tpu_custom_call.1} parent=63 // pred_region
          %s387 = sand.u32 %s35, 1
          %s388 = scalar_lea.sflag [#allocation3], %s387
          %s389 = sand.u32 %s35, 1
          %s390 = smul.addr %s389, 128
          %s391 = scalar_lea.vmem [#allocation2], %s390
          %s392 = smul.u32 4, %s25
          %s394 = ssub.s32 2048, 2048
          %395 = vsyncadd %s388, %s394
          %s396 = smul.addr %s392, 8
          %s397 = smul.addr %s396, 64
          %s398 = scalar_lea.hbm %s0, %s397
          %s399 = sshll.u32 %s391, 4
          %s400 = int_to_ptr.vmem [resolvable:$true] %s399
          %405 = dma.hbm_to_vmem [thread:$0]  %s398, 2048, %s400, %s388, 512, 512, 32
        $region68: #{tpu_custom_call.1} parent=63 // pred_fallthru
          _
      $region64: #{tpu_custom_call.1} parent=5 // pred_fallthru
        _
      %p406 = scmp.le.s32.totalorder 1, %s25
      %p407 = scmp.lt.s32.totalorder %s25, 9
      %p408 = pnand %p406, %p407
      %p409 = pneg %p408
      // Predicated region
      $region69: #{tpu_custom_call.1} parent=5 // pred_check
        _
      $region70: #{tpu_custom_call.1} parent=5 // pred_check_branch
        %411 = sbr.rel (%p408) target = $region72
      $region71: #{tpu_custom_call.1} parent=5 // pred_region
        %s412 = ssub.s32 %s25, 1
        %s413 = sand.u32 %s38, 1
        %s414 = scalar_lea.sflag [#allocation3], %s413
        %s415 = sand.u32 %s38, 1
        %s416 = smul.addr %s415, 128
        %s417 = scalar_lea.vmem [#allocation2], %s416
        // Predicated region
        $region73: #{tpu_custom_call.1} parent=71 // pred_check
          %p418 = pneg %p51
        $region74: #{tpu_custom_call.1} parent=71 // pred_check_branch
          %420 = sbr.rel (%p418) target = $region76
        $region75: #{tpu_custom_call.1} parent=71 // pred_region
          %421 = dma.done %s414, 2048
        $region76: #{tpu_custom_call.1} parent=71 // pred_fallthru
          _
        %s422 = sand.u32 %s38, 1
        %s423 = scalar_lea.sflag [#allocation3], %s422
        %s424 = sand.u32 %s38, 1
        %s425 = smul.addr %s424, 128
        %s426 = scalar_lea.vmem [#allocation2], %s425
        %p427 = pneg %p51
        %p428 = pneg %p48
        %p429 = pneg %p72
        %p430 = pneg %p69
        %p431 = pneg %p93
        %p432 = pneg %p90
        %p433 = pneg %p114
        %p434 = pneg %p111
        %p435 = pneg %p135
        %p436 = pneg %p132
        %p437 = pneg %p156
        %p438 = pneg %p153
        %p439 = pneg %p177
        %p440 = pneg %p174
        %p441 = pneg %p198
        %p442 = pneg %p195
        %p443 = pneg %p219
        %p444 = pneg %p216
        %p445 = pneg %p240
        %p446 = pneg %p237
        %p447 = pneg %p261
        %p448 = pneg %p258
        %p449 = pneg %p282
        %p450 = pneg %p279
        %p451 = pneg %p303
        %p452 = pneg %p300
        %p453 = pneg %p329
        %p454 = pneg %p326
        %s455 = sand.u32 %s316, 1
        %s456 = scalar_lea.sflag [#allocation4], %s455
        %s457 = sand.u32 %s316, 1
        %s458 = smul.addr %s457, 128
        %s459 = scalar_lea.vmem [#allocation5], %s458
        %s460 = smul.u32 4, %s30
        %s461 = smul.u32 4, %s30
        %v463 = vld [vmem:[%s417] sm:$0xff]
        %v464 = vld [vmem:[%s417 + $0x8] sm:$0xff]
        %v465 = vld [vmem:[%s417 + $0x10] sm:$0xff]
        %v466 = vld [vmem:[%s417 + $0x18] sm:$0xff]
        %v467 = vld [vmem:[%s417 + $0x20] sm:$0xff]
        %v468 = vld [vmem:[%s417 + $0x28] sm:$0xff]
        %v469 = vld [vmem:[%s417 + $0x30] sm:$0xff]
        %v470 = vld [vmem:[%s417 + $0x38] sm:$0xff]
        %v471 = vld [vmem:[%s417 + $0x40] sm:$0xff]
        %v472 = vld [vmem:[%s417 + $0x48] sm:$0xff]
        %v473 = vld [vmem:[%s417 + $0x50] sm:$0xff]
        %v474 = vld [vmem:[%s417 + $0x58] sm:$0xff]
        %v475 = vld [vmem:[%s417 + $0x60] sm:$0xff]
        %v476 = vld [vmem:[%s417 + $0x68] sm:$0xff]
        %v477 = vld [vmem:[%s417 + $0x70] sm:$0xff]
        %v478 = vld [vmem:[%s417 + $0x78] sm:$0xff]
        %v479 = vld [vmem:[%s1] sm:$0xf]
        %v480 = vld [vmem:[%s1 + $0x4] sm:$0xf]
        %v481 = vld [vmem:[%s1 + $0x8] sm:$0xf]
        %v482 = vld [vmem:[%s1 + $0xc] sm:$0xf]
        %v483 = vld [vmem:[%s1 + $0x10] sm:$0xf]
        %v484 = vld [vmem:[%s1 + $0x14] sm:$0xf]
        %v485 = vld [vmem:[%s1 + $0x18] sm:$0xf]
        %v486 = vld [vmem:[%s1 + $0x1c] sm:$0xf]
        %v487 = vld [vmem:[%s1 + $0x20] sm:$0xf]
        %v488 = vld [vmem:[%s1 + $0x24] sm:$0xf]
        %v489 = vld [vmem:[%s1 + $0x28] sm:$0xf]
        %v490 = vld [vmem:[%s1 + $0x2c] sm:$0xf]
        %v491 = vld [vmem:[%s1 + $0x30] sm:$0xf]
        %v492 = vld [vmem:[%s1 + $0x34] sm:$0xf]
        %v493 = vld [vmem:[%s1 + $0x38] sm:$0xf]
        %v494 = vld [vmem:[%s1 + $0x3c] sm:$0xf]
        %v495 = vld [vmem:[%s1 + $0x40] sm:$0xf]
        %v496 = vld [vmem:[%s1 + $0x44] sm:$0xf]
        %v497 = vld [vmem:[%s1 + $0x48] sm:$0xf]
        %v498 = vld [vmem:[%s1 + $0x4c] sm:$0xf]
        %v499 = vld [vmem:[%s1 + $0x50] sm:$0xf]
        %v500 = vld [vmem:[%s1 + $0x54] sm:$0xf]
        %v501 = vld [vmem:[%s1 + $0x58] sm:$0xf]
        %v502 = vld [vmem:[%s1 + $0x5c] sm:$0xf]
        %v503 = vld [vmem:[%s1 + $0x60] sm:$0xf]
        %v504 = vld [vmem:[%s1 + $0x64] sm:$0xf]
        %v505 = vld [vmem:[%s1 + $0x68] sm:$0xf]
        %v506 = vld [vmem:[%s1 + $0x6c] sm:$0xf]
        %v507 = vld [vmem:[%s1 + $0x70] sm:$0xf]
        %v508 = vld [vmem:[%s1 + $0x74] sm:$0xf]
        %v509 = vld [vmem:[%s1 + $0x78] sm:$0xf]
        %v510 = vld [vmem:[%s1 + $0x7c] sm:$0xf]
        %v511 = vld [vmem:[%s1 + $0x80] sm:$0xf]
        %v512 = vld [vmem:[%s1 + $0x84] sm:$0xf]
        %v513 = vld [vmem:[%s1 + $0x88] sm:$0xf]
        %v514 = vld [vmem:[%s1 + $0x8c] sm:$0xf]
        %v515 = vld [vmem:[%s1 + $0x90] sm:$0xf]
        %v516 = vld [vmem:[%s1 + $0x94] sm:$0xf]
        %v517 = vld [vmem:[%s1 + $0x98] sm:$0xf]
        %v518 = vld [vmem:[%s1 + $0x9c] sm:$0xf]
        %v519 = vld [vmem:[%s1 + $0xa0] sm:$0xf]
        %v520 = vld [vmem:[%s1 + $0xa4] sm:$0xf]
        %v521 = vld [vmem:[%s1 + $0xa8] sm:$0xf]
        %v522 = vld [vmem:[%s1 + $0xac] sm:$0xf]
        %v523 = vld [vmem:[%s1 + $0xb0] sm:$0xf]
        %v524 = vld [vmem:[%s1 + $0xb4] sm:$0xf]
        %v525 = vld [vmem:[%s1 + $0xb8] sm:$0xf]
        %v526 = vld [vmem:[%s1 + $0xbc] sm:$0xf]
        %v527 = vld [vmem:[%s1 + $0xc0] sm:$0xf]
        %v528 = vld [vmem:[%s1 + $0xc4] sm:$0xf]
        %v529 = vld [vmem:[%s1 + $0xc8] sm:$0xf]
        %v530 = vld [vmem:[%s1 + $0xcc] sm:$0xf]
        %v531 = vld [vmem:[%s1 + $0xd0] sm:$0xf]
        %v532 = vld [vmem:[%s1 + $0xd4] sm:$0xf]
        %v533 = vld [vmem:[%s1 + $0xd8] sm:$0xf]
        %v534 = vld [vmem:[%s1 + $0xdc] sm:$0xf]
        %v535 = vld [vmem:[%s1 + $0xe0] sm:$0xf]
        %v536 = vld [vmem:[%s1 + $0xe4] sm:$0xf]
        %v537 = vld [vmem:[%s1 + $0xe8] sm:$0xf]
        %v538 = vld [vmem:[%s1 + $0xec] sm:$0xf]
        %v539 = vld [vmem:[%s1 + $0xf0] sm:$0xf]
        %v540 = vld [vmem:[%s1 + $0xf4] sm:$0xf]
        %v541 = vld [vmem:[%s1 + $0xf8] sm:$0xf]
        %v542 = vld [vmem:[%s1 + $0xfc] sm:$0xf]
        %v543 = vld [vmem:[%s1 + $0x100] sm:$0xf]
        %v544 = vld [vmem:[%s1 + $0x104] sm:$0xf]
        %v545 = vld [vmem:[%s1 + $0x108] sm:$0xf]
        %v546 = vld [vmem:[%s1 + $0x10c] sm:$0xf]
        %v547 = vld [vmem:[%s1 + $0x110] sm:$0xf]
        %v548 = vld [vmem:[%s1 + $0x114] sm:$0xf]
        %v549 = vld [vmem:[%s1 + $0x118] sm:$0xf]
        %v550 = vld [vmem:[%s1 + $0x11c] sm:$0xf]
        %v551 = vld [vmem:[%s1 + $0x120] sm:$0xf]
        %v552 = vld [vmem:[%s1 + $0x124] sm:$0xf]
        %v553 = vld [vmem:[%s1 + $0x128] sm:$0xf]
        %v554 = vld [vmem:[%s1 + $0x12c] sm:$0xf]
        %v555 = vld [vmem:[%s1 + $0x130] sm:$0xf]
        %v556 = vld [vmem:[%s1 + $0x134] sm:$0xf]
        %v557 = vld [vmem:[%s1 + $0x138] sm:$0xf]
        %v558 = vld [vmem:[%s1 + $0x13c] sm:$0xf]
        %v559 = vld [vmem:[%s1 + $0x140] sm:$0xf]
        %v560 = vld [vmem:[%s1 + $0x144] sm:$0xf]
        %v561 = vld [vmem:[%s1 + $0x148] sm:$0xf]
        %v562 = vld [vmem:[%s1 + $0x14c] sm:$0xf]
        %v563 = vld [vmem:[%s1 + $0x150] sm:$0xf]
        %v564 = vld [vmem:[%s1 + $0x154] sm:$0xf]
        %v565 = vld [vmem:[%s1 + $0x158] sm:$0xf]
        %v566 = vld [vmem:[%s1 + $0x15c] sm:$0xf]
        %v567 = vld [vmem:[%s1 + $0x160] sm:$0xf]
        %v568 = vld [vmem:[%s1 + $0x164] sm:$0xf]
        %v569 = vld [vmem:[%s1 + $0x168] sm:$0xf]
        %v570 = vld [vmem:[%s1 + $0x16c] sm:$0xf]
        %v571 = vld [vmem:[%s1 + $0x170] sm:$0xf]
        %v572 = vld [vmem:[%s1 + $0x174] sm:$0xf]
        %v573 = vld [vmem:[%s1 + $0x178] sm:$0xf]
        %v574 = vld [vmem:[%s1 + $0x17c] sm:$0xf]
        %v575 = vld [vmem:[%s1 + $0x180] sm:$0xf]
        %v576 = vld [vmem:[%s1 + $0x184] sm:$0xf]
        %v577 = vld [vmem:[%s1 + $0x188] sm:$0xf]
        %v578 = vld [vmem:[%s1 + $0x18c] sm:$0xf]
        %v579 = vld [vmem:[%s1 + $0x190] sm:$0xf]
        %v580 = vld [vmem:[%s1 + $0x194] sm:$0xf]
        %v581 = vld [vmem:[%s1 + $0x198] sm:$0xf]
        %v582 = vld [vmem:[%s1 + $0x19c] sm:$0xf]
        %v583 = vld [vmem:[%s1 + $0x1a0] sm:$0xf]
        %v584 = vld [vmem:[%s1 + $0x1a4] sm:$0xf]
        %v585 = vld [vmem:[%s1 + $0x1a8] sm:$0xf]
        %v586 = vld [vmem:[%s1 + $0x1ac] sm:$0xf]
        %v587 = vld [vmem:[%s1 + $0x1b0] sm:$0xf]
        %v588 = vld [vmem:[%s1 + $0x1b4] sm:$0xf]
        %v589 = vld [vmem:[%s1 + $0x1b8] sm:$0xf]
        %v590 = vld [vmem:[%s1 + $0x1bc] sm:$0xf]
        %v591 = vld [vmem:[%s1 + $0x1c0] sm:$0xf]
        %v592 = vld [vmem:[%s1 + $0x1c4] sm:$0xf]
        %v593 = vld [vmem:[%s1 + $0x1c8] sm:$0xf]
        %v594 = vld [vmem:[%s1 + $0x1cc] sm:$0xf]
        %v595 = vld [vmem:[%s1 + $0x1d0] sm:$0xf]
        %v596 = vld [vmem:[%s1 + $0x1d4] sm:$0xf]
        %v597 = vld [vmem:[%s1 + $0x1d8] sm:$0xf]
        %v598 = vld [vmem:[%s1 + $0x1dc] sm:$0xf]
        %v599 = vld [vmem:[%s1 + $0x1e0] sm:$0xf]
        %v600 = vld [vmem:[%s1 + $0x1e4] sm:$0xf]
        %v601 = vld [vmem:[%s1 + $0x1e8] sm:$0xf]
        %v602 = vld [vmem:[%s1 + $0x1ec] sm:$0xf]
        %v603 = vld [vmem:[%s1 + $0x1f0] sm:$0xf]
        %v604 = vld [vmem:[%s1 + $0x1f4] sm:$0xf]
        %v605 = vld [vmem:[%s1 + $0x1f8] sm:$0xf]
        %v606 = vld [vmem:[%s1 + $0x1fc] sm:$0xf]
        %v607 = vld [vmem:[%s2] sm:$0x1]
        %v609 = vlaneseq
        %v610 = vshrl.u32 %v609, 7
        %v611 = vsub.s32 0, %v610
        %v612 = vrot.slane %v607, %v611
        %v630 = vunpack.c.l.b16 %v463
        %v631 = vunpack.c.h.b16 %v463
        %v632 = vunpack.c.l.b16 %v464
        %v633 = vunpack.c.h.b16 %v464
        %v634 = vunpack.c.l.b16 %v465
        %v635 = vunpack.c.h.b16 %v465
        %v636 = vunpack.c.l.b16 %v466
        %v637 = vunpack.c.h.b16 %v466
        %v638 = vunpack.c.l.b16 %v467
        %v639 = vunpack.c.h.b16 %v467
        %v640 = vunpack.c.l.b16 %v468
        %v641 = vunpack.c.h.b16 %v468
        %v642 = vunpack.c.l.b16 %v469
        %v643 = vunpack.c.h.b16 %v469
        %v644 = vunpack.c.l.b16 %v470
        %v645 = vunpack.c.h.b16 %v470
        %v646 = vunpack.c.l.b16 %v471
        %v647 = vunpack.c.h.b16 %v471
        %v648 = vunpack.c.l.b16 %v472
        %v649 = vunpack.c.h.b16 %v472
        %v650 = vunpack.c.l.b16 %v473
        %v651 = vunpack.c.h.b16 %v473
        %v652 = vunpack.c.l.b16 %v474
        %v653 = vunpack.c.h.b16 %v474
        %v654 = vunpack.c.l.b16 %v475
        %v655 = vunpack.c.h.b16 %v475
        %v656 = vunpack.c.l.b16 %v476
        %v657 = vunpack.c.h.b16 %v476
        %v658 = vunpack.c.l.b16 %v477
        %v659 = vunpack.c.h.b16 %v477
        %v660 = vunpack.c.l.b16 %v478
        %v661 = vunpack.c.h.b16 %v478
        %v662 = vpack.c.b16 %v638, %v630
        %v663 = vpack.c.b16 %v639, %v631
        %v664 = vpack.c.b16 %v640, %v632
        %v665 = vpack.c.b16 %v641, %v633
        %v666 = vpack.c.b16 %v642, %v634
        %v667 = vpack.c.b16 %v643, %v635
        %v668 = vpack.c.b16 %v644, %v636
        %v669 = vpack.c.b16 %v645, %v637
        %v670 = vpack.c.b16 %v654, %v646
        %v671 = vpack.c.b16 %v655, %v647
        %v672 = vpack.c.b16 %v656, %v648
        %v673 = vpack.c.b16 %v657, %v649
        %v674 = vpack.c.b16 %v658, %v650
        %v675 = vpack.c.b16 %v659, %v651
        %v676 = vpack.c.b16 %v660, %v652
        %v677 = vpack.c.b16 %v661, %v653
        %v822 = vunpack.c.l.b16 %v479
        %v823 = vunpack.c.l.b16 %v480
        %v824 = vunpack.c.l.b16 %v481
        %v825 = vunpack.c.l.b16 %v482
        %v826 = vunpack.c.l.b16 %v483
        %v827 = vunpack.c.l.b16 %v484
        %v828 = vunpack.c.l.b16 %v485
        %v829 = vunpack.c.l.b16 %v486
        %v830 = vunpack.c.l.b16 %v487
        %v831 = vunpack.c.l.b16 %v488
        %v832 = vunpack.c.l.b16 %v489
        %v833 = vunpack.c.l.b16 %v490
        %v834 = vunpack.c.l.b16 %v491
        %v835 = vunpack.c.l.b16 %v492
        %v836 = vunpack.c.l.b16 %v493
        %v837 = vunpack.c.l.b16 %v494
        %v838 = vunpack.c.l.b16 %v495
        %v839 = vunpack.c.l.b16 %v496
        %v840 = vunpack.c.l.b16 %v497
        %v841 = vunpack.c.l.b16 %v498
        %v842 = vunpack.c.l.b16 %v499
        %v843 = vunpack.c.l.b16 %v500
        %v844 = vunpack.c.l.b16 %v501
        %v845 = vunpack.c.l.b16 %v502
        %v846 = vunpack.c.l.b16 %v503
        %v847 = vunpack.c.l.b16 %v504
        %v848 = vunpack.c.l.b16 %v505
        %v849 = vunpack.c.l.b16 %v506
        %v850 = vunpack.c.l.b16 %v507
        %v851 = vunpack.c.l.b16 %v508
        %v852 = vunpack.c.l.b16 %v509
        %v853 = vunpack.c.l.b16 %v510
        %v854 = vunpack.c.l.b16 %v511
        %v855 = vunpack.c.l.b16 %v512
        %v856 = vunpack.c.l.b16 %v513
        %v857 = vunpack.c.l.b16 %v514
        %v858 = vunpack.c.l.b16 %v515
        %v859 = vunpack.c.l.b16 %v516
        %v860 = vunpack.c.l.b16 %v517
        %v861 = vunpack.c.l.b16 %v518
        %v862 = vunpack.c.l.b16 %v519
        %v863 = vunpack.c.l.b16 %v520
        %v864 = vunpack.c.l.b16 %v521
        %v865 = vunpack.c.l.b16 %v522
        %v866 = vunpack.c.l.b16 %v523
        %v867 = vunpack.c.l.b16 %v524
        %v868 = vunpack.c.l.b16 %v525
        %v869 = vunpack.c.l.b16 %v526
        %v870 = vunpack.c.l.b16 %v527
        %v871 = vunpack.c.l.b16 %v528
        %v872 = vunpack.c.l.b16 %v529
        %v873 = vunpack.c.l.b16 %v530
        %v874 = vunpack.c.l.b16 %v531
        %v875 = vunpack.c.l.b16 %v532
        %v876 = vunpack.c.l.b16 %v533
        %v877 = vunpack.c.l.b16 %v534
        %v878 = vunpack.c.l.b16 %v535
        %v879 = vunpack.c.l.b16 %v536
        %v880 = vunpack.c.l.b16 %v537
        %v881 = vunpack.c.l.b16 %v538
        %v882 = vunpack.c.l.b16 %v539
        %v883 = vunpack.c.l.b16 %v540
        %v884 = vunpack.c.l.b16 %v541
        %v885 = vunpack.c.l.b16 %v542
        %v886 = vunpack.c.l.b16 %v543
        %v887 = vunpack.c.l.b16 %v544
        %v888 = vunpack.c.l.b16 %v545
        %v889 = vunpack.c.l.b16 %v546
        %v890 = vunpack.c.l.b16 %v547
        %v891 = vunpack.c.l.b16 %v548
        %v892 = vunpack.c.l.b16 %v549
        %v893 = vunpack.c.l.b16 %v550
        %v894 = vunpack.c.l.b16 %v551
        %v895 = vunpack.c.l.b16 %v552
        %v896 = vunpack.c.l.b16 %v553
        %v897 = vunpack.c.l.b16 %v554
        %v898 = vunpack.c.l.b16 %v555
        %v899 = vunpack.c.l.b16 %v556
        %v900 = vunpack.c.l.b16 %v557
        %v901 = vunpack.c.l.b16 %v558
        %v902 = vunpack.c.l.b16 %v559
        %v903 = vunpack.c.l.b16 %v560
        %v904 = vunpack.c.l.b16 %v561
        %v905 = vunpack.c.l.b16 %v562
        %v906 = vunpack.c.l.b16 %v563
        %v907 = vunpack.c.l.b16 %v564
        %v908 = vunpack.c.l.b16 %v565
        %v909 = vunpack.c.l.b16 %v566
        %v910 = vunpack.c.l.b16 %v567
        %v911 = vunpack.c.l.b16 %v568
        %v912 = vunpack.c.l.b16 %v569
        %v913 = vunpack.c.l.b16 %v570
        %v914 = vunpack.c.l.b16 %v571
        %v915 = vunpack.c.l.b16 %v572
        %v916 = vunpack.c.l.b16 %v573
        %v917 = vunpack.c.l.b16 %v574
        %v918 = vunpack.c.l.b16 %v575
        %v919 = vunpack.c.l.b16 %v576
        %v920 = vunpack.c.l.b16 %v577
        %v921 = vunpack.c.l.b16 %v578
        %v922 = vunpack.c.l.b16 %v579
        %v923 = vunpack.c.l.b16 %v580
        %v924 = vunpack.c.l.b16 %v581
        %v925 = vunpack.c.l.b16 %v582
        %v926 = vunpack.c.l.b16 %v583
        %v927 = vunpack.c.l.b16 %v584
        %v928 = vunpack.c.l.b16 %v585
        %v929 = vunpack.c.l.b16 %v586
        %v930 = vunpack.c.l.b16 %v587
        %v931 = vunpack.c.l.b16 %v588
        %v932 = vunpack.c.l.b16 %v589
        %v933 = vunpack.c.l.b16 %v590
        %v934 = vunpack.c.l.b16 %v591
        %v935 = vunpack.c.l.b16 %v592
        %v936 = vunpack.c.l.b16 %v593
        %v937 = vunpack.c.l.b16 %v594
        %v938 = vunpack.c.l.b16 %v595
        %v939 = vunpack.c.l.b16 %v596
        %v940 = vunpack.c.l.b16 %v597
        %v941 = vunpack.c.l.b16 %v598
        %v942 = vunpack.c.l.b16 %v599
        %v943 = vunpack.c.l.b16 %v600
        %v944 = vunpack.c.l.b16 %v601
        %v945 = vunpack.c.l.b16 %v602
        %v946 = vunpack.c.l.b16 %v603
        %v947 = vunpack.c.l.b16 %v604
        %v948 = vunpack.c.l.b16 %v605
        %v949 = vunpack.c.l.b16 %v606
        %v950 = vpack.c.b16 %v823, %v822
        %v951 = vpack.c.b16 %v825, %v824
        %v952 = vpack.c.b16 %v827, %v826
        %v953 = vpack.c.b16 %v829, %v828
        %v954 = vpack.c.b16 %v831, %v830
        %v955 = vpack.c.b16 %v833, %v832
        %v956 = vpack.c.b16 %v835, %v834
        %v957 = vpack.c.b16 %v837, %v836
        %v958 = vpack.c.b16 %v839, %v838
        %v959 = vpack.c.b16 %v841, %v840
        %v960 = vpack.c.b16 %v843, %v842
        %v961 = vpack.c.b16 %v845, %v844
        %v962 = vpack.c.b16 %v847, %v846
        %v963 = vpack.c.b16 %v849, %v848
        %v964 = vpack.c.b16 %v851, %v850
        %v965 = vpack.c.b16 %v853, %v852
        %v966 = vpack.c.b16 %v855, %v854
        %v967 = vpack.c.b16 %v857, %v856
        %v968 = vpack.c.b16 %v859, %v858
        %v969 = vpack.c.b16 %v861, %v860
        %v970 = vpack.c.b16 %v863, %v862
        %v971 = vpack.c.b16 %v865, %v864
        %v972 = vpack.c.b16 %v867, %v866
        %v973 = vpack.c.b16 %v869, %v868
        %v974 = vpack.c.b16 %v871, %v870
        %v975 = vpack.c.b16 %v873, %v872
        %v976 = vpack.c.b16 %v875, %v874
        %v977 = vpack.c.b16 %v877, %v876
        %v978 = vpack.c.b16 %v879, %v878
        %v979 = vpack.c.b16 %v881, %v880
        %v980 = vpack.c.b16 %v883, %v882
        %v981 = vpack.c.b16 %v885, %v884
        %v982 = vpack.c.b16 %v887, %v886
        %v983 = vpack.c.b16 %v889, %v888
        %v984 = vpack.c.b16 %v891, %v890
        %v985 = vpack.c.b16 %v893, %v892
        %v986 = vpack.c.b16 %v895, %v894
        %v987 = vpack.c.b16 %v897, %v896
        %v988 = vpack.c.b16 %v899, %v898
        %v989 = vpack.c.b16 %v901, %v900
        %v990 = vpack.c.b16 %v903, %v902
        %v991 = vpack.c.b16 %v905, %v904
        %v992 = vpack.c.b16 %v907, %v906
        %v993 = vpack.c.b16 %v909, %v908
        %v994 = vpack.c.b16 %v911, %v910
        %v995 = vpack.c.b16 %v913, %v912
        %v996 = vpack.c.b16 %v915, %v914
        %v997 = vpack.c.b16 %v917, %v916
        %v998 = vpack.c.b16 %v919, %v918
        %v999 = vpack.c.b16 %v921, %v920
        %v1000 = vpack.c.b16 %v923, %v922
        %v1001 = vpack.c.b16 %v925, %v924
        %v1002 = vpack.c.b16 %v927, %v926
        %v1003 = vpack.c.b16 %v929, %v928
        %v1004 = vpack.c.b16 %v931, %v930
        %v1005 = vpack.c.b16 %v933, %v932
        %v1006 = vpack.c.b16 %v935, %v934
        %v1007 = vpack.c.b16 %v937, %v936
        %v1008 = vpack.c.b16 %v939, %v938
        %v1009 = vpack.c.b16 %v941, %v940
        %v1010 = vpack.c.b16 %v943, %v942
        %v1011 = vpack.c.b16 %v945, %v944
        %v1012 = vpack.c.b16 %v947, %v946
        %v1013 = vpack.c.b16 %v949, %v948
        %1078 = vmatprep.subr.bf16.mxu0 0
        %1079 = vmatpush1.bf16.msra.mxu0 %v950
        %1080 = vmatprep.subr.bf16.mxu0 0
        %1081 = vmatpush1.bf16.msra.mxu0 %v951
        %1082 = vmatprep.subr.bf16.mxu0 0
        %1083 = vmatpush1.bf16.msra.mxu0 %v952
        %1084 = vmatprep.subr.bf16.mxu0 0
        %1085 = vmatpush1.bf16.msra.mxu0 %v953
        %1086 = vmatprep.subr.bf16.mxu0 0
        %1087 = vmatpush1.bf16.msra.mxu0 %v954
        %1088 = vmatprep.subr.bf16.mxu0 0
        %1089 = vmatpush1.bf16.msra.mxu0 %v955
        %1090 = vmatprep.subr.bf16.mxu0 0
        %1091 = vmatpush1.bf16.msra.mxu0 %v956
        %1092 = vmatprep.subr.bf16.mxu0 0
        %1093 = vmatpush1.bf16.msra.mxu0 %v957
        %1094 = vmatprep.subr.bf16.mxu0 0
        %1095 = vmatpush1.bf16.msra.mxu0 %v958
        %1096 = vmatprep.subr.bf16.mxu0 0
        %1097 = vmatpush1.bf16.msra.mxu0 %v959
        %1098 = vmatprep.subr.bf16.mxu0 0
        %1099 = vmatpush1.bf16.msra.mxu0 %v960
        %1100 = vmatprep.subr.bf16.mxu0 0
        %1101 = vmatpush1.bf16.msra.mxu0 %v961
        %1102 = vmatprep.subr.bf16.mxu0 0
        %1103 = vmatpush1.bf16.msra.mxu0 %v962
        %1104 = vmatprep.subr.bf16.mxu0 0
        %1105 = vmatpush1.bf16.msra.mxu0 %v963
        %1106 = vmatprep.subr.bf16.mxu0 0
        %1107 = vmatpush1.bf16.msra.mxu0 %v964
        %1108 = vmatprep.subr.bf16.mxu0 0
        %1109 = vmatpush1.bf16.msra.mxu0 %v965
        %1110 = vmatprep.mubr.bf16.mxu0 %v663
        %1111 = vmatmul.mubr.bf16.gmra.mrb[0].mxu0 %v662
        %v1112 = vpop.f32.mrb[0].mxu0
        %v1113 = vadd.f32 %v612, %v1112
        %v1114 = vpop.f32.mrb[0].mxu0
        %v1115 = vpop.f32.mrb[0].mxu0
        %v1116 = vadd.f32 %v612, %v1115
        %v1117 = vpop.f32.mrb[0].mxu0
        %1118 = vmatprep.mubr.bf16.mxu0 %v671
        %1119 = vmatmul.mubr.bf16.gmra.mrb[0].mxu0 %v670
        %v1120 = vpop.f32.mrb[0].mxu0
        %v1121 = vadd.f32 %v612, %v1120
        %v1122 = vpop.f32.mrb[0].mxu0
        %v1123 = vpop.f32.mrb[0].mxu0
        %v1124 = vadd.f32 %v612, %v1123
        %v1125 = vpop.f32.mrb[0].mxu0
        %1126 = vdwg.mxu0
        %1127 = vmatprep.subr.bf16.mxu0 0
        %1128 = vmatpush1.bf16.msra.mxu0 %v966
        %1129 = vmatprep.subr.bf16.mxu0 0
        %1130 = vmatpush1.bf16.msra.mxu0 %v967
        %1131 = vmatprep.subr.bf16.mxu0 0
        %1132 = vmatpush1.bf16.msra.mxu0 %v968
        %1133 = vmatprep.subr.bf16.mxu0 0
        %1134 = vmatpush1.bf16.msra.mxu0 %v969
        %1135 = vmatprep.subr.bf16.mxu0 0
        %1136 = vmatpush1.bf16.msra.mxu0 %v970
        %1137 = vmatprep.subr.bf16.mxu0 0
        %1138 = vmatpush1.bf16.msra.mxu0 %v971
        %1139 = vmatprep.subr.bf16.mxu0 0
        %1140 = vmatpush1.bf16.msra.mxu0 %v972
        %1141 = vmatprep.subr.bf16.mxu0 0
        %1142 = vmatpush1.bf16.msra.mxu0 %v973
        %1143 = vmatprep.subr.bf16.mxu0 0
        %1144 = vmatpush1.bf16.msra.mxu0 %v974
        %1145 = vmatprep.subr.bf16.mxu0 0
        %1146 = vmatpush1.bf16.msra.mxu0 %v975
        %1147 = vmatprep.subr.bf16.mxu0 0
        %1148 = vmatpush1.bf16.msra.mxu0 %v976
        %1149 = vmatprep.subr.bf16.mxu0 0
        %1150 = vmatpush1.bf16.msra.mxu0 %v977
        %1151 = vmatprep.subr.bf16.mxu0 0
        %1152 = vmatpush1.bf16.msra.mxu0 %v978
        %1153 = vmatprep.subr.bf16.mxu0 0
        %1154 = vmatpush1.bf16.msra.mxu0 %v979
        %1155 = vmatprep.subr.bf16.mxu0 0
        %1156 = vmatpush1.bf16.msra.mxu0 %v980
        %1157 = vmatprep.subr.bf16.mxu0 0
        %1158 = vmatpush1.bf16.msra.mxu0 %v981
        %1159 = vmatprep.mubr.bf16.mxu0 %v665
        %1160 = vmatmul.mubr.bf16.gmra.mrb[0].mxu0 %v664
        %v1161 = vpop.f32.mrb[0].mxu0
        %v1162 = vadd.f32 %v1113, %v1161
        %v1163 = vpop.f32.mrb[0].mxu0
        %v1164 = vpop.f32.mrb[0].mxu0
        %v1165 = vadd.f32 %v1116, %v1164
        %v1166 = vpop.f32.mrb[0].mxu0
        %1167 = vmatprep.mubr.bf16.mxu0 %v673
        %1168 = vmatmul.mubr.bf16.gmra.mrb[0].mxu0 %v672
        %v1169 = vpop.f32.mrb[0].mxu0
        %v1170 = vadd.f32 %v1121, %v1169
        %v1171 = vpop.f32.mrb[0].mxu0
        %v1172 = vpop.f32.mrb[0].mxu0
        %v1173 = vadd.f32 %v1124, %v1172
        %v1174 = vpop.f32.mrb[0].mxu0
        %1175 = vdwg.mxu0
        %1176 = vmatprep.subr.bf16.mxu0 0
        %1177 = vmatpush1.bf16.msra.mxu0 %v982
        %1178 = vmatprep.subr.bf16.mxu0 0
        %1179 = vmatpush1.bf16.msra.mxu0 %v983
        %1180 = vmatprep.subr.bf16.mxu0 0
        %1181 = vmatpush1.bf16.msra.mxu0 %v984
        %1182 = vmatprep.subr.bf16.mxu0 0
        %1183 = vmatpush1.bf16.msra.mxu0 %v985
        %1184 = vmatprep.subr.bf16.mxu0 0
        %1185 = vmatpush1.bf16.msra.mxu0 %v986
        %1186 = vmatprep.subr.bf16.mxu0 0
        %1187 = vmatpush1.bf16.msra.mxu0 %v987
        %1188 = vmatprep.subr.bf16.mxu0 0
        %1189 = vmatpush1.bf16.msra.mxu0 %v988
        %1190 = vmatprep.subr.bf16.mxu0 0
        %1191 = vmatpush1.bf16.msra.mxu0 %v989
        %1192 = vmatprep.subr.bf16.mxu0 0
        %1193 = vmatpush1.bf16.msra.mxu0 %v990
        %1194 = vmatprep.subr.bf16.mxu0 0
        %1195 = vmatpush1.bf16.msra.mxu0 %v991
        %1196 = vmatprep.subr.bf16.mxu0 0
        %1197 = vmatpush1.bf16.msra.mxu0 %v992
        %1198 = vmatprep.subr.bf16.mxu0 0
        %1199 = vmatpush1.bf16.msra.mxu0 %v993
        %1200 = vmatprep.subr.bf16.mxu0 0
        %1201 = vmatpush1.bf16.msra.mxu0 %v994
        %1202 = vmatprep.subr.bf16.mxu0 0
        %1203 = vmatpush1.bf16.msra.mxu0 %v995
        %1204 = vmatprep.subr.bf16.mxu0 0
        %1205 = vmatpush1.bf16.msra.mxu0 %v996
        %1206 = vmatprep.subr.bf16.mxu0 0
        %1207 = vmatpush1.bf16.msra.mxu0 %v997
        %1208 = vmatprep.mubr.bf16.mxu0 %v667
        %1209 = vmatmul.mubr.bf16.gmra.mrb[0].mxu0 %v666
        %v1210 = vpop.f32.mrb[0].mxu0
        %v1211 = vadd.f32 %v1162, %v1210
        %v1212 = vpop.f32.mrb[0].mxu0
        %v1213 = vpop.f32.mrb[0].mxu0
        %v1214 = vadd.f32 %v1165, %v1213
        %v1215 = vpop.f32.mrb[0].mxu0
        %1216 = vmatprep.mubr.bf16.mxu0 %v675
        %1217 = vmatmul.mubr.bf16.gmra.mrb[0].mxu0 %v674
        %v1218 = vpop.f32.mrb[0].mxu0
        %v1219 = vadd.f32 %v1170, %v1218
        %v1220 = vpop.f32.mrb[0].mxu0
        %v1221 = vpop.f32.mrb[0].mxu0
        %v1222 = vadd.f32 %v1173, %v1221
        %v1223 = vpop.f32.mrb[0].mxu0
        %1224 = vdwg.mxu0
        %1225 = vmatprep.subr.bf16.mxu0 0
        %1226 = vmatpush1.bf16.msra.mxu0 %v998
        %1227 = vmatprep.subr.bf16.mxu0 0
        %1228 = vmatpush1.bf16.msra.mxu0 %v999
        %1229 = vmatprep.subr.bf16.mxu0 0
        %1230 = vmatpush1.bf16.msra.mxu0 %v1000
        %1231 = vmatprep.subr.bf16.mxu0 0
        %1232 = vmatpush1.bf16.msra.mxu0 %v1001
        %1233 = vmatprep.subr.bf16.mxu0 0
        %1234 = vmatpush1.bf16.msra.mxu0 %v1002
        %1235 = vmatprep.subr.bf16.mxu0 0
        %1236 = vmatpush1.bf16.msra.mxu0 %v1003
        %1237 = vmatprep.subr.bf16.mxu0 0
        %1238 = vmatpush1.bf16.msra.mxu0 %v1004
        %1239 = vmatprep.subr.bf16.mxu0 0
        %1240 = vmatpush1.bf16.msra.mxu0 %v1005
        %1241 = vmatprep.subr.bf16.mxu0 0
        %1242 = vmatpush1.bf16.msra.mxu0 %v1006
        %1243 = vmatprep.subr.bf16.mxu0 0
        %1244 = vmatpush1.bf16.msra.mxu0 %v1007
        %1245 = vmatprep.subr.bf16.mxu0 0
        %1246 = vmatpush1.bf16.msra.mxu0 %v1008
        %1247 = vmatprep.subr.bf16.mxu0 0
        %1248 = vmatpush1.bf16.msra.mxu0 %v1009
        %1249 = vmatprep.subr.bf16.mxu0 0
        %1250 = vmatpush1.bf16.msra.mxu0 %v1010
        %1251 = vmatprep.subr.bf16.mxu0 0
        %1252 = vmatpush1.bf16.msra.mxu0 %v1011
        %1253 = vmatprep.subr.bf16.mxu0 0
        %1254 = vmatpush1.bf16.msra.mxu0 %v1012
        %1255 = vmatprep.subr.bf16.mxu0 0
        %1256 = vmatpush1.bf16.msra.mxu0 %v1013
        %1257 = vmatprep.mubr.bf16.mxu0 %v669
        %1258 = vmatmul.mubr.bf16.gmra.mrb[0].mxu0 %v668
        %v1259 = vpop.f32.mrb[0].mxu0
        %v1260 = vadd.f32 %v1211, %v1259
        %v1261 = vpop.f32.mrb[0].mxu0
        %v1262 = vpop.f32.mrb[0].mxu0
        %v1263 = vadd.f32 %v1214, %v1262
        %v1264 = vpop.f32.mrb[0].mxu0
        %1265 = vmatprep.mubr.bf16.mxu0 %v677
        %1266 = vmatmul.mubr.bf16.gmra.mrb[0].mxu0 %v676
        %v1267 = vpop.f32.mrb[0].mxu0
        %v1268 = vadd.f32 %v1219, %v1267
        %v1269 = vpop.f32.mrb[0].mxu0
        %v1270 = vpop.f32.mrb[0].mxu0
        %v1271 = vadd.f32 %v1222, %v1270
        %v1272 = vpop.f32.mrb[0].mxu0
        %1273 = vdwg.mxu0
        %v1274 = vtanh.pop %v1260
        %v1275 = vtanh.pop %v1263
        %v1276 = vtanh.pop %v1268
        %v1277 = vtanh.pop %v1271
        %v1278 = vpack.c.bf16 %v1275, %v1274
        %v1279 = vpack.c.bf16 %v1277, %v1276
        %v1280 = vld [vmem:[%s3] sm:$0xf]
        %v1281 = vld [vmem:[%s3 + $0x4] sm:$0xf]
        %v1282 = vld [vmem:[%s3 + $0x8] sm:$0xf]
        %v1283 = vld [vmem:[%s3 + $0xc] sm:$0xf]
        %v1284 = vld [vmem:[%s4] sm:$0x1]
        %v1286 = vlaneseq
        %v1287 = vshrl.u32 %v1286, 7
        %v1288 = vsub.s32 0, %v1287
        %v1289 = vrot.slane %v1284, %v1288
        %v1295 = vunpack.c.l.b16 %v1280
        %v1296 = vunpack.c.l.b16 %v1281
        %v1297 = vunpack.c.l.b16 %v1282
        %v1298 = vunpack.c.l.b16 %v1283
        %v1299 = vpack.c.b16 %v1296, %v1295
        %v1300 = vpack.c.b16 %v1298, %v1297
        %vm1303 = vcmask 261120
        %v1305 = vsel %vm1303, %v1278, 0
        %v1308 = vsel %vm1303, %v1279, 0
        %1310 = vmatprep.subr.bf16.mxu0 0
        %1311 = vmatpush1.bf16.msra.mxu0 %v1299
        %1312 = vmatprep.subr.bf16.mxu0 0
        %1313 = vmatpush1.bf16.msra.mxu0 %v1300
        %1314 = vmatprep.subr.bf16.mxu0 0
        %1315 = vmatpush1.bf16.msra.mxu0 0
        %1316 = vmatprep.subr.bf16.mxu0 0
        %1317 = vmatpush1.bf16.msra.mxu0 0
        %1318 = vmatprep.subr.bf16.mxu0 0
        %1319 = vmatpush1.bf16.msra.mxu0 0
        %1320 = vmatprep.subr.bf16.mxu0 0
        %1321 = vmatpush1.bf16.msra.mxu0 0
        %1322 = vmatprep.subr.bf16.mxu0 0
        %1323 = vmatpush1.bf16.msra.mxu0 0
        %1324 = vmatprep.subr.bf16.mxu0 0
        %1325 = vmatpush1.bf16.msra.mxu0 0
        %1326 = vmatprep.subr.bf16.mxu0 0
        %1327 = vmatpush1.bf16.msra.mxu0 0
        %1328 = vmatprep.subr.bf16.mxu0 0
        %1329 = vmatpush1.bf16.msra.mxu0 0
        %1330 = vmatprep.subr.bf16.mxu0 0
        %1331 = vmatpush1.bf16.msra.mxu0 0
        %1332 = vmatprep.subr.bf16.mxu0 0
        %1333 = vmatpush1.bf16.msra.mxu0 0
        %1334 = vmatprep.subr.bf16.mxu0 0
        %1335 = vmatpush1.bf16.msra.mxu0 0
        %1336 = vmatprep.subr.bf16.mxu0 0
        %1337 = vmatpush1.bf16.msra.mxu0 0
        %1338 = vmatprep.subr.bf16.mxu0 0
        %1339 = vmatpush1.bf16.msra.mxu0 0
        %1340 = vmatprep.subr.bf16.mxu0 0
        %1341 = vmatpush1.bf16.msra.mxu0 0
        %1342 = vmatprep.mubr.bf16.mxu0 0
        %1343 = vmatmul.mubr.bf16.gmra.mrb[0].mxu0 %v1305
        %v1344 = vpop.f32.mrb[0].mxu0
        %v1345 = vadd.f32 %v1289, %v1344
        %v1346 = vpop.f32.mrb[0].mxu0
        %v1347 = vpop.f32.mrb[0].mxu0
        %v1348 = vadd.f32 %v1289, %v1347
        %v1349 = vpop.f32.mrb[0].mxu0
        %1350 = vmatprep.mubr.bf16.mxu0 0
        %1351 = vmatmul.mubr.bf16.gmra.mrb[0].mxu0 %v1308
        %v1352 = vpop.f32.mrb[0].mxu0
        %v1353 = vadd.f32 %v1289, %v1352
        %v1354 = vpop.f32.mrb[0].mxu0
        %v1355 = vpop.f32.mrb[0].mxu0
        %v1356 = vadd.f32 %v1289, %v1355
        %v1357 = vpop.f32.mrb[0].mxu0
        %1358 = vdwg.mxu0
        %v1359 = vtanh.pop %v1345
        %v1360 = vtanh.pop %v1348
        %v1361 = vtanh.pop %v1353
        %v1362 = vtanh.pop %v1356
        %v1363 = vpack.c.bf16 %v1360, %v1359
        %v1364 = vpack.c.bf16 %v1362, %v1361
        %v1365 = vld [vmem:[%s5] sm:$0xf]
        %v1366 = vld [vmem:[%s6] sm:$0x1]
        %v1368 = vlaneseq
        %v1369 = vshrl.u32 %v1368, 7
        %v1370 = vsub.s32 0, %v1369
        %v1371 = vrot.slane %v1366, %v1370
        %vm1373 = vcmask 64512
        %v1375 = vsel %vm1373, %v1363, 0
        %v1378 = vsel %vm1373, %v1364, 0
        %vm1380 = vcmask 1043456
        %v1382 = vsel %vm1380, %v1365, 0
        %1384 = vmatprep.subr.bf16.mxu0 0
        %1385 = vmatpush1.bf16.msra.mxu0 %v1382
        %1386 = vmatprep.subr.bf16.mxu0 0
        %1387 = vmatpush1.bf16.msra.mxu0 0
        %1388 = vmatprep.subr.bf16.mxu0 0
        %1389 = vmatpush1.bf16.msra.mxu0 0
        %1390 = vmatprep.subr.bf16.mxu0 0
        %1391 = vmatpush1.bf16.msra.mxu0 0
        %1392 = vmatprep.subr.bf16.mxu0 0
        %1393 = vmatpush1.bf16.msra.mxu0 0
        %1394 = vmatprep.subr.bf16.mxu0 0
        %1395 = vmatpush1.bf16.msra.mxu0 0
        %1396 = vmatprep.subr.bf16.mxu0 0
        %1397 = vmatpush1.bf16.msra.mxu0 0
        %1398 = vmatprep.subr.bf16.mxu0 0
        %1399 = vmatpush1.bf16.msra.mxu0 0
        %1400 = vmatprep.subr.bf16.mxu0 0
        %1401 = vmatpush1.bf16.msra.mxu0 0
        %1402 = vmatprep.subr.bf16.mxu0 0
        %1403 = vmatpush1.bf16.msra.mxu0 0
        %1404 = vmatprep.subr.bf16.mxu0 0
        %1405 = vmatpush1.bf16.msra.mxu0 0
        %1406 = vmatprep.subr.bf16.mxu0 0
        %1407 = vmatpush1.bf16.msra.mxu0 0
        %1408 = vmatprep.subr.bf16.mxu0 0
        %1409 = vmatpush1.bf16.msra.mxu0 0
        %1410 = vmatprep.subr.bf16.mxu0 0
        %1411 = vmatpush1.bf16.msra.mxu0 0
        %1412 = vmatprep.subr.bf16.mxu0 0
        %1413 = vmatpush1.bf16.msra.mxu0 0
        %1414 = vmatprep.subr.bf16.mxu0 0
        %1415 = vmatpush1.bf16.msra.mxu0 0
        %1416 = vmatprep.mubr.bf16.mxu0 0
        %1417 = vmatmul.mubr.bf16.gmra.mrb[0].mxu0 %v1375
        %v1418 = vpop.f32.mrb[0].mxu0
        %v1419 = vadd.f32 %v1371, %v1418
        %v1420 = vpop.f32.mrb[0].mxu0
        %v1421 = vpop.f32.mrb[0].mxu0
        %v1422 = vadd.f32 %v1371, %v1421
        %v1423 = vpop.f32.mrb[0].mxu0
        %1424 = vmatprep.mubr.bf16.mxu0 0
        %1425 = vmatmul.mubr.bf16.gmra.mrb[0].mxu0 %v1378
        %v1426 = vpop.f32.mrb[0].mxu0
        %v1427 = vadd.f32 %v1371, %v1426
        %v1428 = vpop.f32.mrb[0].mxu0
        %v1429 = vpop.f32.mrb[0].mxu0
        %v1430 = vadd.f32 %v1371, %v1429
        %v1431 = vpop.f32.mrb[0].mxu0
        %1432 = vdwg.mxu0
        %v1433 = vtanh.pop %v1419
        %v1434 = vtanh.pop %v1422
        %v1435 = vtanh.pop %v1427
        %v1436 = vtanh.pop %v1430
        %v1437 = vpack.c.bf16 %v1434, %v1433
        %v1438 = vpack.c.bf16 %v1436, %v1435
        %v1439 = vld [vmem:[%s7] sm:$0xf]
        %v1440 = vld [vmem:[%s7 + $0x4] sm:$0xf]
        %v1441 = vld [vmem:[%s8] sm:$0x1]
        %v1443 = vlaneseq
        %v1444 = vshrl.u32 %v1443, 7
        %v1445 = vsub.s32 0, %v1444
        %v1446 = vrot.slane %v1441, %v1445
        %v1450 = vunpack.c.l.b16 %v1439
        %v1451 = vunpack.c.l.b16 %v1440
        %v1452 = vpack.c.b16 %v1451, %v1450
        %vm1454 = vcmask 130048
        %v1456 = vsel %vm1454, %v1437, 0
        %v1459 = vsel %vm1454, %v1438, 0
        %1461 = vmatprep.subr.bf16.mxu0 0
        %1462 = vmatpush1.bf16.msra.mxu0 %v1452
        %1463 = vmatprep.subr.bf16.mxu0 0
        %1464 = vmatpush1.bf16.msra.mxu0 0
        %1465 = vmatprep.subr.bf16.mxu0 0
        %1466 = vmatpush1.bf16.msra.mxu0 0
        %1467 = vmatprep.subr.bf16.mxu0 0
        %1468 = vmatpush1.bf16.msra.mxu0 0
        %1469 = vmatprep.subr.bf16.mxu0 0
        %1470 = vmatpush1.bf16.msra.mxu0 0
        %1471 = vmatprep.subr.bf16.mxu0 0
        %1472 = vmatpush1.bf16.msra.mxu0 0
        %1473 = vmatprep.subr.bf16.mxu0 0
        %1474 = vmatpush1.bf16.msra.mxu0 0
        %1475 = vmatprep.subr.bf16.mxu0 0
        %1476 = vmatpush1.bf16.msra.mxu0 0
        %1477 = vmatprep.subr.bf16.mxu0 0
        %1478 = vmatpush1.bf16.msra.mxu0 0
        %1479 = vmatprep.subr.bf16.mxu0 0
        %1480 = vmatpush1.bf16.msra.mxu0 0
        %1481 = vmatprep.subr.bf16.mxu0 0
        %1482 = vmatpush1.bf16.msra.mxu0 0
        %1483 = vmatprep.subr.bf16.mxu0 0
        %1484 = vmatpush1.bf16.msra.mxu0 0
        %1485 = vmatprep.subr.bf16.mxu0 0
        %1486 = vmatpush1.bf16.msra.mxu0 0
        %1487 = vmatprep.subr.bf16.mxu0 0
        %1488 = vmatpush1.bf16.msra.mxu0 0
        %1489 = vmatprep.subr.bf16.mxu0 0
        %1490 = vmatpush1.bf16.msra.mxu0 0
        %1491 = vmatprep.subr.bf16.mxu0 0
        %1492 = vmatpush1.bf16.msra.mxu0 0
        %1493 = vmatprep.mubr.bf16.mxu0 0
        %1494 = vmatmul.mubr.bf16.gmra.mrb[0].mxu0 %v1456
        %v1495 = vpop.f32.mrb[0].mxu0
        %v1496 = vadd.f32 %v1446, %v1495
        %v1497 = vpop.f32.mrb[0].mxu0
        %v1498 = vpop.f32.mrb[0].mxu0
        %v1499 = vadd.f32 %v1446, %v1498
        %v1500 = vpop.f32.mrb[0].mxu0
        %1501 = vmatprep.mubr.bf16.mxu0 0
        %1502 = vmatmul.mubr.bf16.gmra.mrb[0].mxu0 %v1459
        %v1503 = vpop.f32.mrb[0].mxu0
        %v1504 = vadd.f32 %v1446, %v1503
        %v1505 = vpop.f32.mrb[0].mxu0
        %v1506 = vpop.f32.mrb[0].mxu0
        %v1507 = vadd.f32 %v1446, %v1506
        %v1508 = vpop.f32.mrb[0].mxu0
        %1509 = vdwg.mxu0
        %v1510 = vtanh.pop %v1496
        %v1511 = vtanh.pop %v1499
        %v1512 = vtanh.pop %v1504
        %v1513 = vtanh.pop %v1507
        %v1514 = vpack.c.bf16 %v1511, %v1510
        %v1515 = vpack.c.bf16 %v1513, %v1512
        %v1516 = vld [vmem:[%s9] sm:$0xf]
        %v1517 = vld [vmem:[%s10] sm:$0x1]
        %v1519 = vlaneseq
        %v1520 = vshrl.u32 %v1519, 7
        %v1521 = vsub.s32 0, %v1520
        %v1522 = vrot.slane %v1517, %v1521
        %v1525 = vsel %vm1373, %v1514, 0
        %v1528 = vsel %vm1373, %v1515, 0
        %v1531 = vsel %vm1380, %v1516, 0
        %1533 = vmatprep.subr.bf16.mxu0 0
        %1534 = vmatpush1.bf16.msra.mxu0 %v1531
        %1535 = vmatprep.subr.bf16.mxu0 0
        %1536 = vmatpush1.bf16.msra.mxu0 0
        %1537 = vmatprep.subr.bf16.mxu0 0
        %1538 = vmatpush1.bf16.msra.mxu0 0
        %1539 = vmatprep.subr.bf16.mxu0 0
        %1540 = vmatpush1.bf16.msra.mxu0 0
        %1541 = vmatprep.subr.bf16.mxu0 0
        %1542 = vmatpush1.bf16.msra.mxu0 0
        %1543 = vmatprep.subr.bf16.mxu0 0
        %1544 = vmatpush1.bf16.msra.mxu0 0
        %1545 = vmatprep.subr.bf16.mxu0 0
        %1546 = vmatpush1.bf16.msra.mxu0 0
        %1547 = vmatprep.subr.bf16.mxu0 0
        %1548 = vmatpush1.bf16.msra.mxu0 0
        %1549 = vmatprep.subr.bf16.mxu0 0
        %1550 = vmatpush1.bf16.msra.mxu0 0
        %1551 = vmatprep.subr.bf16.mxu0 0
        %1552 = vmatpush1.bf16.msra.mxu0 0
        %1553 = vmatprep.subr.bf16.mxu0 0
        %1554 = vmatpush1.bf16.msra.mxu0 0
        %1555 = vmatprep.subr.bf16.mxu0 0
        %1556 = vmatpush1.bf16.msra.mxu0 0
        %1557 = vmatprep.subr.bf16.mxu0 0
        %1558 = vmatpush1.bf16.msra.mxu0 0
        %1559 = vmatprep.subr.bf16.mxu0 0
        %1560 = vmatpush1.bf16.msra.mxu0 0
        %1561 = vmatprep.subr.bf16.mxu0 0
        %1562 = vmatpush1.bf16.msra.mxu0 0
        %1563 = vmatprep.subr.bf16.mxu0 0
        %1564 = vmatpush1.bf16.msra.mxu0 0
        %1565 = vmatprep.mubr.bf16.mxu0 0
        %1566 = vmatmul.mubr.bf16.gmra.mrb[0].mxu0 %v1525
        %v1567 = vpop.f32.mrb[0].mxu0
        %v1568 = vadd.f32 %v1522, %v1567
        %v1569 = vpop.f32.mrb[0].mxu0
        %v1570 = vpop.f32.mrb[0].mxu0
        %v1571 = vadd.f32 %v1522, %v1570
        %v1572 = vpop.f32.mrb[0].mxu0
        %1573 = vmatprep.mubr.bf16.mxu0 0
        %1574 = vmatmul.mubr.bf16.gmra.mrb[0].mxu0 %v1528
        %v1575 = vpop.f32.mrb[0].mxu0
        %v1576 = vadd.f32 %v1522, %v1575
        %v1577 = vpop.f32.mrb[0].mxu0
        %v1578 = vpop.f32.mrb[0].mxu0
        %v1579 = vadd.f32 %v1522, %v1578
        %v1580 = vpop.f32.mrb[0].mxu0
        %1581 = vdwg.mxu0
        %v1582 = vtanh.pop %v1568
        %v1583 = vtanh.pop %v1571
        %v1584 = vtanh.pop %v1576
        %v1585 = vtanh.pop %v1579
        %v1586 = vpack.c.bf16 %v1583, %v1582
        %v1587 = vpack.c.bf16 %v1585, %v1584
        %v1588 = vld [vmem:[%s11] sm:$0xff]
        %v1589 = vld [vmem:[%s11 + $0x8] sm:$0xff]
        %v1590 = vld [vmem:[%s11 + $0x10] sm:$0xff]
        %v1591 = vld [vmem:[%s11 + $0x18] sm:$0xff]
        %v1592 = vld [vmem:[%s11 + $0x20] sm:$0xff]
        %v1593 = vld [vmem:[%s11 + $0x28] sm:$0xff]
        %v1594 = vld [vmem:[%s11 + $0x30] sm:$0xff]
        %v1595 = vld [vmem:[%s11 + $0x38] sm:$0xff]
        %v1596 = vld [vmem:[%s11 + $0x40] sm:$0xff]
        %v1597 = vld [vmem:[%s11 + $0x48] sm:$0xff]
        %v1598 = vld [vmem:[%s11 + $0x50] sm:$0xff]
        %v1599 = vld [vmem:[%s11 + $0x58] sm:$0xff]
        %v1600 = vld [vmem:[%s11 + $0x60] sm:$0xff]
        %v1601 = vld [vmem:[%s11 + $0x68] sm:$0xff]
        %v1602 = vld [vmem:[%s11 + $0x70] sm:$0xff]
        %v1603 = vld [vmem:[%s11 + $0x78] sm:$0xff]
        %v1604 = vld [vmem:[%s12] sm:$0xff]
        %v1606 = vlaneseq
        %v1607 = vshrl.u32 %v1606, 7
        %v1608 = vsub.s32 0, %v1607
        %v1609 = vrot.slane %v1604, %v1608
        %v1610 = vlaneseq
        %v1611 = vshrl.u32 %v1610, 7
        %v1612 = vsub.s32 1, %v1611
        %v1613 = vrot.slane %v1604, %v1612
        %v1614 = vlaneseq
        %v1615 = vshrl.u32 %v1614, 7
        %v1616 = vsub.s32 2, %v1615
        %v1617 = vrot.slane %v1604, %v1616
        %v1618 = vlaneseq
        %v1619 = vshrl.u32 %v1618, 7
        %v1620 = vsub.s32 3, %v1619
        %v1621 = vrot.slane %v1604, %v1620
        %v1622 = vlaneseq
        %v1623 = vshrl.u32 %v1622, 7
        %v1624 = vsub.s32 4, %v1623
        %v1625 = vrot.slane %v1604, %v1624
        %v1626 = vlaneseq
        %v1627 = vshrl.u32 %v1626, 7
        %v1628 = vsub.s32 5, %v1627
        %v1629 = vrot.slane %v1604, %v1628
        %v1630 = vlaneseq
        %v1631 = vshrl.u32 %v1630, 7
        %v1632 = vsub.s32 6, %v1631
        %v1633 = vrot.slane %v1604, %v1632
        %v1634 = vlaneseq
        %v1635 = vshrl.u32 %v1634, 7
        %v1636 = vsub.s32 7, %v1635
        %v1637 = vrot.slane %v1604, %v1636
        %v1662 = vunpack.c.l.b16 %v1588
        %v1663 = vunpack.c.h.b16 %v1588
        %v1664 = vunpack.c.l.b16 %v1589
        %v1665 = vunpack.c.h.b16 %v1589
        %v1666 = vunpack.c.l.b16 %v1590
        %v1667 = vunpack.c.h.b16 %v1590
        %v1668 = vunpack.c.l.b16 %v1591
        %v1669 = vunpack.c.h.b16 %v1591
        %v1670 = vunpack.c.l.b16 %v1592
        %v1671 = vunpack.c.h.b16 %v1592
        %v1672 = vunpack.c.l.b16 %v1593
        %v1673 = vunpack.c.h.b16 %v1593
        %v1674 = vunpack.c.l.b16 %v1594
        %v1675 = vunpack.c.h.b16 %v1594
        %v1676 = vunpack.c.l.b16 %v1595
        %v1677 = vunpack.c.h.b16 %v1595
        %v1678 = vunpack.c.l.b16 %v1596
        %v1679 = vunpack.c.h.b16 %v1596
        %v1680 = vunpack.c.l.b16 %v1597
        %v1681 = vunpack.c.h.b16 %v1597
        %v1682 = vunpack.c.l.b16 %v1598
        %v1683 = vunpack.c.h.b16 %v1598
        %v1684 = vunpack.c.l.b16 %v1599
        %v1685 = vunpack.c.h.b16 %v1599
        %v1686 = vunpack.c.l.b16 %v1600
        %v1687 = vunpack.c.h.b16 %v1600
        %v1688 = vunpack.c.l.b16 %v1601
        %v1689 = vunpack.c.h.b16 %v1601
        %v1690 = vunpack.c.l.b16 %v1602
        %v1691 = vunpack.c.h.b16 %v1602
        %v1692 = vunpack.c.l.b16 %v1603
        %v1693 = vunpack.c.h.b16 %v1603
        %v1694 = vpack.c.b16 %v1670, %v1662
        %v1695 = vpack.c.b16 %v1671, %v1663
        %v1696 = vpack.c.b16 %v1672, %v1664
        %v1697 = vpack.c.b16 %v1673, %v1665
        %v1698 = vpack.c.b16 %v1674, %v1666
        %v1699 = vpack.c.b16 %v1675, %v1667
        %v1700 = vpack.c.b16 %v1676, %v1668
        %v1701 = vpack.c.b16 %v1677, %v1669
        %v1702 = vpack.c.b16 %v1686, %v1678
        %v1703 = vpack.c.b16 %v1687, %v1679
        %v1704 = vpack.c.b16 %v1688, %v1680
        %v1705 = vpack.c.b16 %v1689, %v1681
        %v1706 = vpack.c.b16 %v1690, %v1682
        %v1707 = vpack.c.b16 %v1691, %v1683
        %v1708 = vpack.c.b16 %v1692, %v1684
        %v1709 = vpack.c.b16 %v1693, %v1685
        %v1727 = vsel %vm1303, %v1586, 0
        %v1730 = vsel %vm1303, %v1587, 0
        %1732 = vmatprep.subr.bf16.mxu0 %v1695
        %1733 = vmatpush1.bf16.msra.mxu0 %v1694
        %1734 = vmatprep.subr.bf16.mxu0 %v1703
        %1735 = vmatpush1.bf16.msra.mxu0 %v1702
        %1736 = vmatprep.subr.bf16.mxu0 0
        %1737 = vmatpush1.bf16.msra.mxu0 0
        %1738 = vmatprep.subr.bf16.mxu0 0
        %1739 = vmatpush1.bf16.msra.mxu0 0
        %1740 = vmatprep.subr.bf16.mxu0 0
        %1741 = vmatpush1.bf16.msra.mxu0 0
        %1742 = vmatprep.subr.bf16.mxu0 0
        %1743 = vmatpush1.bf16.msra.mxu0 0
        %1744 = vmatprep.subr.bf16.mxu0 0
        %1745 = vmatpush1.bf16.msra.mxu0 0
        %1746 = vmatprep.subr.bf16.mxu0 0
        %1747 = vmatpush1.bf16.msra.mxu0 0
        %1748 = vmatprep.subr.bf16.mxu0 0
        %1749 = vmatpush1.bf16.msra.mxu0 0
        %1750 = vmatprep.subr.bf16.mxu0 0
        %1751 = vmatpush1.bf16.msra.mxu0 0
        %1752 = vmatprep.subr.bf16.mxu0 0
        %1753 = vmatpush1.bf16.msra.mxu0 0
        %1754 = vmatprep.subr.bf16.mxu0 0
        %1755 = vmatpush1.bf16.msra.mxu0 0
        %1756 = vmatprep.subr.bf16.mxu0 0
        %1757 = vmatpush1.bf16.msra.mxu0 0
        %1758 = vmatprep.subr.bf16.mxu0 0
        %1759 = vmatpush1.bf16.msra.mxu0 0
        %1760 = vmatprep.subr.bf16.mxu0 0
        %1761 = vmatpush1.bf16.msra.mxu0 0
        %1762 = vmatprep.subr.bf16.mxu0 0
        %1763 = vmatpush1.bf16.msra.mxu0 0
        %1764 = vmatprep.mubr.bf16.mxu0 0
        %1765 = vmatmul.mubr.bf16.gmra.mrb[0].mxu0 %v1727
        %v1766 = vpop.f32.mrb[0].mxu0
        %v1767 = vadd.f32 %v1609, %v1766
        %v1768 = vpop.f32.mrb[0].mxu0
        %v1769 = vadd.f32 %v1613, %v1768
        %v1770 = vpop.f32.mrb[0].mxu0
        %v1771 = vadd.f32 %v1609, %v1770
        %v1772 = vpop.f32.mrb[0].mxu0
        %v1773 = vadd.f32 %v1613, %v1772
        %1774 = vmatprep.mubr.bf16.mxu0 0
        %1775 = vmatmul.mubr.bf16.gmra.mrb[0].mxu0 %v1730
        %v1776 = vpop.f32.mrb[0].mxu0
        %v1777 = vadd.f32 %v1609, %v1776
        %v1778 = vpop.f32.mrb[0].mxu0
        %v1779 = vadd.f32 %v1613, %v1778
        %v1780 = vpop.f32.mrb[0].mxu0
        %v1781 = vadd.f32 %v1609, %v1780
        %v1782 = vpop.f32.mrb[0].mxu0
        %v1783 = vadd.f32 %v1613, %v1782
        %1784 = vdwg.mxu0
        %1785 = vmatprep.subr.bf16.mxu0 %v1697
        %1786 = vmatpush1.bf16.msra.mxu0 %v1696
        %1787 = vmatprep.subr.bf16.mxu0 %v1705
        %1788 = vmatpush1.bf16.msra.mxu0 %v1704
        %1789 = vmatprep.subr.bf16.mxu0 0
        %1790 = vmatpush1.bf16.msra.mxu0 0
        %1791 = vmatprep.subr.bf16.mxu0 0
        %1792 = vmatpush1.bf16.msra.mxu0 0
        %1793 = vmatprep.subr.bf16.mxu0 0
        %1794 = vmatpush1.bf16.msra.mxu0 0
        %1795 = vmatprep.subr.bf16.mxu0 0
        %1796 = vmatpush1.bf16.msra.mxu0 0
        %1797 = vmatprep.subr.bf16.mxu0 0
        %1798 = vmatpush1.bf16.msra.mxu0 0
        %1799 = vmatprep.subr.bf16.mxu0 0
        %1800 = vmatpush1.bf16.msra.mxu0 0
        %1801 = vmatprep.subr.bf16.mxu0 0
        %1802 = vmatpush1.bf16.msra.mxu0 0
        %1803 = vmatprep.subr.bf16.mxu0 0
        %1804 = vmatpush1.bf16.msra.mxu0 0
        %1805 = vmatprep.subr.bf16.mxu0 0
        %1806 = vmatpush1.bf16.msra.mxu0 0
        %1807 = vmatprep.subr.bf16.mxu0 0
        %1808 = vmatpush1.bf16.msra.mxu0 0
        %1809 = vmatprep.subr.bf16.mxu0 0
        %1810 = vmatpush1.bf16.msra.mxu0 0
        %1811 = vmatprep.subr.bf16.mxu0 0
        %1812 = vmatpush1.bf16.msra.mxu0 0
        %1813 = vmatprep.subr.bf16.mxu0 0
        %1814 = vmatpush1.bf16.msra.mxu0 0
        %1815 = vmatprep.subr.bf16.mxu0 0
        %1816 = vmatpush1.bf16.msra.mxu0 0
        %1817 = vmatprep.mubr.bf16.mxu0 0
        %1818 = vmatmul.mubr.bf16.gmra.mrb[0].mxu0 %v1727
        %v1819 = vpop.f32.mrb[0].mxu0
        %v1820 = vadd.f32 %v1617, %v1819
        %v1821 = vpop.f32.mrb[0].mxu0
        %v1822 = vadd.f32 %v1621, %v1821
        %v1823 = vpop.f32.mrb[0].mxu0
        %v1824 = vadd.f32 %v1617, %v1823
        %v1825 = vpop.f32.mrb[0].mxu0
        %v1826 = vadd.f32 %v1621, %v1825
        %1827 = vmatprep.mubr.bf16.mxu0 0
        %1828 = vmatmul.mubr.bf16.gmra.mrb[0].mxu0 %v1730
        %v1829 = vpop.f32.mrb[0].mxu0
        %v1830 = vadd.f32 %v1617, %v1829
        %v1831 = vpop.f32.mrb[0].mxu0
        %v1832 = vadd.f32 %v1621, %v1831
        %v1833 = vpop.f32.mrb[0].mxu0
        %v1834 = vadd.f32 %v1617, %v1833
        %v1835 = vpop.f32.mrb[0].mxu0
        %v1836 = vadd.f32 %v1621, %v1835
        %1837 = vdwg.mxu0
        %1838 = vmatprep.subr.bf16.mxu0 %v1699
        %1839 = vmatpush1.bf16.msra.mxu0 %v1698
        %1840 = vmatprep.subr.bf16.mxu0 %v1707
        %1841 = vmatpush1.bf16.msra.mxu0 %v1706
        %1842 = vmatprep.subr.bf16.mxu0 0
        %1843 = vmatpush1.bf16.msra.mxu0 0
        %1844 = vmatprep.subr.bf16.mxu0 0
        %1845 = vmatpush1.bf16.msra.mxu0 0
        %1846 = vmatprep.subr.bf16.mxu0 0
        %1847 = vmatpush1.bf16.msra.mxu0 0
        %1848 = vmatprep.subr.bf16.mxu0 0
        %1849 = vmatpush1.bf16.msra.mxu0 0
        %1850 = vmatprep.subr.bf16.mxu0 0
        %1851 = vmatpush1.bf16.msra.mxu0 0
        %1852 = vmatprep.subr.bf16.mxu0 0
        %1853 = vmatpush1.bf16.msra.mxu0 0
        %1854 = vmatprep.subr.bf16.mxu0 0
        %1855 = vmatpush1.bf16.msra.mxu0 0
        %1856 = vmatprep.subr.bf16.mxu0 0
        %1857 = vmatpush1.bf16.msra.mxu0 0
        %1858 = vmatprep.subr.bf16.mxu0 0
        %1859 = vmatpush1.bf16.msra.mxu0 0
        %1860 = vmatprep.subr.bf16.mxu0 0
        %1861 = vmatpush1.bf16.msra.mxu0 0
        %1862 = vmatprep.subr.bf16.mxu0 0
        %1863 = vmatpush1.bf16.msra.mxu0 0
        %1864 = vmatprep.subr.bf16.mxu0 0
        %1865 = vmatpush1.bf16.msra.mxu0 0
        %1866 = vmatprep.subr.bf16.mxu0 0
        %1867 = vmatpush1.bf16.msra.mxu0 0
        %1868 = vmatprep.subr.bf16.mxu0 0
        %1869 = vmatpush1.bf16.msra.mxu0 0
        %1870 = vmatprep.mubr.bf16.mxu0 0
        %1871 = vmatmul.mubr.bf16.gmra.mrb[0].mxu0 %v1727
        %v1872 = vpop.f32.mrb[0].mxu0
        %v1873 = vadd.f32 %v1625, %v1872
        %v1874 = vpop.f32.mrb[0].mxu0
        %v1875 = vadd.f32 %v1629, %v1874
        %v1876 = vpop.f32.mrb[0].mxu0
        %v1877 = vadd.f32 %v1625, %v1876
        %v1878 = vpop.f32.mrb[0].mxu0
        %v1879 = vadd.f32 %v1629, %v1878
        %1880 = vmatprep.mubr.bf16.mxu0 0
        %1881 = vmatmul.mubr.bf16.gmra.mrb[0].mxu0 %v1730
        %v1882 = vpop.f32.mrb[0].mxu0
        %v1883 = vadd.f32 %v1625, %v1882
        %v1884 = vpop.f32.mrb[0].mxu0
        %v1885 = vadd.f32 %v1629, %v1884
        %v1886 = vpop.f32.mrb[0].mxu0
        %v1887 = vadd.f32 %v1625, %v1886
        %v1888 = vpop.f32.mrb[0].mxu0
        %v1889 = vadd.f32 %v1629, %v1888
        %1890 = vdwg.mxu0
        %1891 = vmatprep.subr.bf16.mxu0 %v1701
        %1892 = vmatpush1.bf16.msra.mxu0 %v1700
        %1893 = vmatprep.subr.bf16.mxu0 %v1709
        %1894 = vmatpush1.bf16.msra.mxu0 %v1708
        %1895 = vmatprep.subr.bf16.mxu0 0
        %1896 = vmatpush1.bf16.msra.mxu0 0
        %1897 = vmatprep.subr.bf16.mxu0 0
        %1898 = vmatpush1.bf16.msra.mxu0 0
        %1899 = vmatprep.subr.bf16.mxu0 0
        %1900 = vmatpush1.bf16.msra.mxu0 0
        %1901 = vmatprep.subr.bf16.mxu0 0
        %1902 = vmatpush1.bf16.msra.mxu0 0
        %1903 = vmatprep.subr.bf16.mxu0 0
        %1904 = vmatpush1.bf16.msra.mxu0 0
        %1905 = vmatprep.subr.bf16.mxu0 0
        %1906 = vmatpush1.bf16.msra.mxu0 0
        %1907 = vmatprep.subr.bf16.mxu0 0
        %1908 = vmatpush1.bf16.msra.mxu0 0
        %1909 = vmatprep.subr.bf16.mxu0 0
        %1910 = vmatpush1.bf16.msra.mxu0 0
        %1911 = vmatprep.subr.bf16.mxu0 0
        %1912 = vmatpush1.bf16.msra.mxu0 0
        %1913 = vmatprep.subr.bf16.mxu0 0
        %1914 = vmatpush1.bf16.msra.mxu0 0
        %1915 = vmatprep.subr.bf16.mxu0 0
        %1916 = vmatpush1.bf16.msra.mxu0 0
        %1917 = vmatprep.subr.bf16.mxu0 0
        %1918 = vmatpush1.bf16.msra.mxu0 0
        %1919 = vmatprep.subr.bf16.mxu0 0
        %1920 = vmatpush1.bf16.msra.mxu0 0
        %1921 = vmatprep.subr.bf16.mxu0 0
        %1922 = vmatpush1.bf16.msra.mxu0 0
        %1923 = vmatprep.mubr.bf16.mxu0 0
        %1924 = vmatmul.mubr.bf16.gmra.mrb[0].mxu0 %v1727
        %v1925 = vpop.f32.mrb[0].mxu0
        %v1926 = vadd.f32 %v1633, %v1925
        %v1927 = vpop.f32.mrb[0].mxu0
        %v1928 = vadd.f32 %v1637, %v1927
        %v1929 = vpop.f32.mrb[0].mxu0
        %v1930 = vadd.f32 %v1633, %v1929
        %v1931 = vpop.f32.mrb[0].mxu0
        %v1932 = vadd.f32 %v1637, %v1931
        %1933 = vmatprep.mubr.bf16.mxu0 0
        %1934 = vmatmul.mubr.bf16.gmra.mrb[0].mxu0 %v1730
        %v1935 = vpop.f32.mrb[0].mxu0
        %v1936 = vadd.f32 %v1633, %v1935
        %v1937 = vpop.f32.mrb[0].mxu0
        %v1938 = vadd.f32 %v1637, %v1937
        %v1939 = vpop.f32.mrb[0].mxu0
        %v1940 = vadd.f32 %v1633, %v1939
        %v1941 = vpop.f32.mrb[0].mxu0
        %v1942 = vadd.f32 %v1637, %v1941
        %1943 = vdwg.mxu0
        %v1944 = vpack.c.bf16 %v1771, %v1767
        %v1945 = vpack.c.bf16 %v1773, %v1769
        %v1946 = vpack.c.bf16 %v1824, %v1820
        %v1947 = vpack.c.bf16 %v1826, %v1822
        %v1948 = vpack.c.bf16 %v1877, %v1873
        %v1949 = vpack.c.bf16 %v1879, %v1875
        %v1950 = vpack.c.bf16 %v1930, %v1926
        %v1951 = vpack.c.bf16 %v1932, %v1928
        %v1952 = vpack.c.bf16 %v1781, %v1777
        %v1953 = vpack.c.bf16 %v1783, %v1779
        %v1954 = vpack.c.bf16 %v1834, %v1830
        %v1955 = vpack.c.bf16 %v1836, %v1832
        %v1956 = vpack.c.bf16 %v1887, %v1883
        %v1957 = vpack.c.bf16 %v1889, %v1885
        %v1958 = vpack.c.bf16 %v1940, %v1936
        %v1959 = vpack.c.bf16 %v1942, %v1938
        %v1976 = vunpack.c.l.b16 %v1944
        %v1977 = vunpack.c.l.b16 %v1945
        %v1978 = vunpack.c.l.b16 %v1946
        %v1979 = vunpack.c.l.b16 %v1947
        %v1980 = vunpack.c.l.b16 %v1948
        %v1981 = vunpack.c.l.b16 %v1949
        %v1982 = vunpack.c.l.b16 %v1950
        %v1983 = vunpack.c.l.b16 %v1951
        %v1984 = vunpack.c.h.b16 %v1944
        %v1985 = vunpack.c.h.b16 %v1945
        %v1986 = vunpack.c.h.b16 %v1946
        %v1987 = vunpack.c.h.b16 %v1947
        %v1988 = vunpack.c.h.b16 %v1948
        %v1989 = vunpack.c.h.b16 %v1949
        %v1990 = vunpack.c.h.b16 %v1950
        %v1991 = vunpack.c.h.b16 %v1951
        %v1992 = vunpack.c.l.b16 %v1952
        %v1993 = vunpack.c.l.b16 %v1953
        %v1994 = vunpack.c.l.b16 %v1954
        %v1995 = vunpack.c.l.b16 %v1955
        %v1996 = vunpack.c.l.b16 %v1956
        %v1997 = vunpack.c.l.b16 %v1957
        %v1998 = vunpack.c.l.b16 %v1958
        %v1999 = vunpack.c.l.b16 %v1959
        %v2000 = vunpack.c.h.b16 %v1952
        %v2001 = vunpack.c.h.b16 %v1953
        %v2002 = vunpack.c.h.b16 %v1954
        %v2003 = vunpack.c.h.b16 %v1955
        %v2004 = vunpack.c.h.b16 %v1956
        %v2005 = vunpack.c.h.b16 %v1957
        %v2006 = vunpack.c.h.b16 %v1958
        %v2007 = vunpack.c.h.b16 %v1959
        %v2008 = vpack.c.b16 %v1977, %v1976
        %v2009 = vpack.c.b16 %v1979, %v1978
        %v2010 = vpack.c.b16 %v1981, %v1980
        %v2011 = vpack.c.b16 %v1983, %v1982
        %v2012 = vpack.c.b16 %v1985, %v1984
        %v2013 = vpack.c.b16 %v1987, %v1986
        %v2014 = vpack.c.b16 %v1989, %v1988
        %v2015 = vpack.c.b16 %v1991, %v1990
        %v2016 = vpack.c.b16 %v1993, %v1992
        %v2017 = vpack.c.b16 %v1995, %v1994
        %v2018 = vpack.c.b16 %v1997, %v1996
        %v2019 = vpack.c.b16 %v1999, %v1998
        %v2020 = vpack.c.b16 %v2001, %v2000
        %v2021 = vpack.c.b16 %v2003, %v2002
        %v2022 = vpack.c.b16 %v2005, %v2004
        %v2023 = vpack.c.b16 %v2007, %v2006
        %2040 = vst [vmem:[%s459] sm:$0xff] %v2008
        %2041 = vst [vmem:[%s459 + $0x8] sm:$0xff] %v2009
        %2042 = vst [vmem:[%s459 + $0x10] sm:$0xff] %v2010
        %2043 = vst [vmem:[%s459 + $0x18] sm:$0xff] %v2011
        %2044 = vst [vmem:[%s459 + $0x20] sm:$0xff] %v2012
        %2045 = vst [vmem:[%s459 + $0x28] sm:$0xff] %v2013
        %2046 = vst [vmem:[%s459 + $0x30] sm:$0xff] %v2014
        %2047 = vst [vmem:[%s459 + $0x38] sm:$0xff] %v2015
        %2048 = vst [vmem:[%s459 + $0x40] sm:$0xff] %v2016
        %2049 = vst [vmem:[%s459 + $0x48] sm:$0xff] %v2017
        %2050 = vst [vmem:[%s459 + $0x50] sm:$0xff] %v2018
        %2051 = vst [vmem:[%s459 + $0x58] sm:$0xff] %v2019
        %2052 = vst [vmem:[%s459 + $0x60] sm:$0xff] %v2020
        %2053 = vst [vmem:[%s459 + $0x68] sm:$0xff] %v2021
        %2054 = vst [vmem:[%s459 + $0x70] sm:$0xff] %v2022
        %2055 = vst [vmem:[%s459 + $0x78] sm:$0xff] %v2023
        %s2056 = sand.u32 %s316, 1
        %s2057 = scalar_lea.sflag [#allocation4], %s2056
        %s2058 = sand.u32 %s316, 1
        %s2059 = smul.addr %s2058, 128
        %s2060 = scalar_lea.vmem [#allocation5], %s2059
        // Predicated region
        $region77: #{tpu_custom_call.1} parent=71 // pred_check
          %p2061 = pneg %p326
        $region78: #{tpu_custom_call.1} parent=71 // pred_check_branch
          %2063 = sbr.rel (%p2061) target = $region80
        $region79: #{tpu_custom_call.1} parent=71 // pred_region
          %s2064 = smul.u32 4, %s30
          %s2066 = ssub.s32 2048, 2048
          %2067 = vsyncadd %s2057, %s2066
          %s2068 = smul.addr %s2064, 8
          %s2069 = smul.addr %s2068, 64
          %s2070 = scalar_lea.hbm %s13, %s2069
          %s2071 = sshll.u32 %s2060, 4
          %s2072 = int_to_ptr.vmem [resolvable:$true] %s2071
          %2077 = dma.vmem_to_hbm [thread:$0]  %s2072, 2048, %s2070, %s2057, 512, 512, 32
        $region80: #{tpu_custom_call.1} parent=71 // pred_fallthru
          _
      $region72: #{tpu_custom_call.1} parent=5 // pred_fallthru
        _
      %p2078 = scmp.le.s32.totalorder 2, %s25
      // Predicated region
      $region81: #{tpu_custom_call.1} parent=5 // pred_check
        %p2079 = pneg %p2078
      $region82: #{tpu_custom_call.1} parent=5 // pred_check_branch
        %2081 = sbr.rel (%p2079) target = $region84
      $region83: #{tpu_custom_call.1} parent=5 // pred_region
        %s2082 = ssub.s32 %s25, 2
        // Predicated region
        $region85: #{tpu_custom_call.1} parent=83 // pred_check
          %p2083 = pneg %p332
        $region86: #{tpu_custom_call.1} parent=83 // pred_check_branch
          %2085 = sbr.rel (%p2083) target = $region88
        $region87: #{tpu_custom_call.1} parent=83 // pred_region
          %s2086 = sand.u32 %s317, 1
          %s2087 = scalar_lea.sflag [#allocation4], %s2086
          %s2088 = sand.u32 %s317, 1
          %s2089 = smul.addr %s2088, 128
          %s2090 = scalar_lea.vmem [#allocation5], %s2089
          %2091 = dma.done %s2087, 2048
        $region88: #{tpu_custom_call.1} parent=83 // pred_fallthru
          _
      $region84: #{tpu_custom_call.1} parent=5 // pred_fallthru
        _
    $region6: #{tpu_custom_call.1} parent=1 // loop_footer
      %s29 = sadd.s32 1, %s25
    $region7: #{tpu_custom_call.1} parent=1 // loop_footer_branch
      %24 = sbr.rel target = $region3
    $region8: #{tpu_custom_call.1} parent=1 // loop_exit
      _
    %2092 = vsyncpa [#allocation3], 1
    %s2093 = scalar_lea.sflag [#allocation3], 1
    %2094 = vsyncpa %s2093, 1
    %2095 = vsyncpa [#allocation4], 1
    %s2096 = scalar_lea.sflag [#allocation4], 1
    %2097 = vsyncpa %s2096, 1

</llo_original>
